<compile_context>
chip_gen: v7x
topology: tpu7x:2x2x1
jax: 0.10.0
libtpu: 0.0.40
codegen_flags: <defaults>
</compile_context>

<pallas_src>
import jax
import jax.numpy as jnp
import numpy as np
from jax.experimental import pallas as pl
from jax.experimental.pallas import tpu as pltpu


# flat-window offsets for a 3x3 stride-1 conv on a width-10 row-major map
_OFFS = tuple((k // 3) * 10 + (k % 3) for k in range(9))   # 0,1,2,10,11,12,20,21,22


# ------------------------------ fused kernel --------------------------------

def _fused_forward_kernel(p1_ref, w1bd_ref, w2f_ref, w3f_ref, scale3_ref,
                          shift3_ref, w4f_ref, wblk_ref, bfc_ref, out_ref):
    f32 = jnp.float32

    # --- conv1 (stride 3): one matmul per 2x2-pool corner.  The block-diag
    # weight puts (conv2-tap, conv1-channel) on sublanes so the pooled result
    # feeds conv2 directly; maxpool is 3 bulk maxes (bias folded downstream).
    w1bd = w1bd_ref[...]                                              # (72, 243)
    d0 = jnp.dot(w1bd, p1_ref[0, 0], preferred_element_type=f32)      # (72, 100)
    d1 = jnp.dot(w1bd, p1_ref[0, 1], preferred_element_type=f32)
    d2 = jnp.dot(w1bd, p1_ref[0, 2], preferred_element_type=f32)
    d3 = jnp.dot(w1bd, p1_ref[0, 3], preferred_element_type=f32)
    m1 = jnp.maximum(jnp.maximum(d0, d1), jnp.maximum(d2, d3))        # maxpool

    # --- conv2 (stride 3 == kernel 3): all 9 taps in one K=72 contraction.
    a2 = jnp.dot(w2f_ref[...], m1, preferred_element_type=f32)        # (16, 100)

    # --- conv3 (stride 1) on the flat width-10 map: 9 shifted windows stacked
    # on the contraction axis, one K=144 matmul, fused bias+BatchNorm affine.
    m3 = jnp.concatenate([a2[:, off:off + 78] for off in _OFFS], axis=0)  # (144,78)
    a3 = jnp.dot(w3f_ref[...], m3, preferred_element_type=f32)        # (16, 78)
    a3 = a3 * scale3_ref[...] + shift3_ref[...]
    # TODO(synk): nn.Dropout is inference-mode identity; train-mode masks not modeled.

    # --- conv4 (stride 1), same flat-window trick (valid at t = s*10+r, s,r<6).
    m4 = jnp.concatenate([a3[:, off:off + 56] for off in _OFFS], axis=0)  # (144,56)
    a4 = jnp.dot(w4f_ref[...], m4, preferred_element_type=f32)        # (4, 56)

    # --- flatten (NCHW order baked into wblk) + Linear: one matmul, then sum
    # the 4 per-channel diagonal blocks; junk lanes hit zero weights.
    K = bfc_ref.shape[-1]
    zz = jnp.dot(a4, wblk_ref[...], preferred_element_type=f32)       # (4, 4K)
    z = bfc_ref[...] + ((zz[0:1, 0:K] + zz[1:2, K:2 * K]) +
                        (zz[2:3, 2 * K:3 * K] + zz[3:4, 3 * K:4 * K]))

    # --- softmax
    z = z - jnp.max(z, axis=-1, keepdims=True)
    e = jnp.exp(z)
    out_ref[0] = e / jnp.sum(e, axis=-1, keepdims=True)


def _rep_spec(shape):
    nd = len(shape)
    return pl.BlockSpec(shape, lambda *_, _nd=nd: (0,) * _nd)


# ------------------------------- forward ------------------------------------

@jax.jit
def testmodel_forward(params, x_nchw):
    n = x_nchw.shape[0]
    w1, b1 = params["conv1"]
    w2, b2 = params["conv2"]
    w3, b3 = params["conv3"]
    w4, b4 = params["conv4"]
    gamma, beta, rmean, rvar = params["bn3"]
    wf, bf = params["fc"]
    K = wf.shape[1]

    # ---- input layout plumbing (one XLA shuffle over the input) -------------
    # conv1 stride == kernel == 3  =>  im2col is a pure reshape/transpose.
    #   h = 18*i + 6*a + 3*dh + kh ,  w = 18*j + 6*b + 3*dw + kw
    # (i,j): conv2 output pos; (a,b): conv2 tap; (dh,dw): pool corner;
    # (kh,kw): conv1 tap; c: input channel.  Per corner, rows = (a,b,kh,kw,c)
    # -> 243 (contraction) and lanes = (i,j) -> 100.  No lane padding.
    x = jnp.transpose(x_nchw, (0, 2, 3, 1))                   # NHWC (n,180,180,3)
    xr = x.reshape(n, 10, 3, 2, 3, 10, 3, 2, 3, 3)            # (n,i,a,dh,kh,j,b,dw,kw,c)
    xr = jnp.transpose(xr, (0, 3, 7, 2, 6, 4, 8, 9, 1, 5))    # (n,dh,dw,a,b,kh,kw,c,i,j)
    p1 = xr.reshape(n, 4, 243, 100)

    # ---- weight layout plumbing + bias/BN folding (tiny, done by XLA) -------
    w1t = w1.reshape(27, 8).T                                  # (8, 27)
    w1bd = jnp.kron(jnp.eye(9, dtype=w1t.dtype), w1t)          # (72, 243) block-diag
    w2f = jnp.transpose(w2.reshape(9, 8, 16), (2, 0, 1)).reshape(16, 72)
    w3f = jnp.transpose(w3.reshape(9, 16, 16), (2, 0, 1)).reshape(16, 144)
    w4f = jnp.transpose(w4.reshape(9, 16, 4), (2, 0, 1)).reshape(4, 144)

    # conv1/conv2 biases are per-channel constants -> fold them (through the
    # maxpool and the convs) into the conv3 affine together with the conv3
    # bias and the eval-mode BatchNorm; the conv4 bias folds into the fc bias.
    c2 = w2f @ jnp.tile(b1, 9) + b2                            # conv2-output const (16,)
    c3 = w3f @ jnp.tile(c2, 9)                                 # conv3-output const (16,)
    scale3 = gamma / jnp.sqrt(rvar + 1e-5)
    shift3 = (c3 + b3 - rmean) * scale3 + beta

    # fc weight: NCHW flatten (c, s, r) remapped onto conv4's flat layout
    # t = s*10 + r (zero weights on row-wrap lanes r in [6,10)), arranged so
    # the whole fc is one (4,56)@(56,4K) matmul.
    wf4 = jnp.pad(wf.reshape(4, 6, 6, K), ((0, 0), (0, 0), (0, 4), (0, 0)))
    wblk = jnp.transpose(wf4.reshape(4, 60, K)[:, :56, :],
                         (1, 0, 2)).reshape(56, 4 * K)          # (56, 4K)
    bfc = bf + b4 @ wf.reshape(4, 36, K).sum(axis=1)            # conv4 bias folded in

    out = pl.pallas_call(
        _fused_forward_kernel,
        out_shape=jax.ShapeDtypeStruct((n, 1, K), jnp.float32),
        grid=(n,),
        in_specs=[
            pl.BlockSpec((1, 4, 243, 100), lambda i: (i, 0, 0, 0)),
            _rep_spec((72, 243)),
            _rep_spec((16, 72)),
            _rep_spec((16, 144)), _rep_spec((16, 1)), _rep_spec((16, 1)),
            _rep_spec((4, 144)),
            _rep_spec((56, 4 * K)), _rep_spec((1, K)),
        ],
        out_specs=pl.BlockSpec((1, 1, K), lambda i: (i, 0, 0)),
        compiler_params=pltpu.CompilerParams(
            dimension_semantics=("parallel",)),   # batch across TCs on v7x
    )(p1, w1bd, w2f, w3f, scale3.reshape(16, 1), shift3.reshape(16, 1),
      w4f, wblk, bfc.reshape(1, K))
    return out.reshape(n, K)


# ------------------------------- model setup --------------------------------

def init_params(key, class_num):
    def conv_init(k, kh, kw, cin, cout):
        k1, k2 = jax.random.split(k)
        bound = 1.0 / np.sqrt(cin * kh * kw)
        w = jax.random.uniform(k1, (kh, kw, cin, cout), jnp.float32, -bound, bound)
        b = jax.random.uniform(k2, (cout,), jnp.float32, -bound, bound)
        return w, b

    keys = jax.random.split(key, 5)
    params = {}
    params["conv1"] = conv_init(keys[0], 3, 3, 3, 8)
    params["conv2"] = conv_init(keys[1], 3, 3, 8, 16)
    params["conv3"] = conv_init(keys[2], 3, 3, 16, 16)
    # BatchNorm2d(16), eval mode: gamma=1, beta=0, running mean=0, running var=1.
    params["bn3"] = (jnp.ones((16,), jnp.float32), jnp.zeros((16,), jnp.float32),
                     jnp.zeros((16,), jnp.float32), jnp.ones((16,), jnp.float32))
    params["conv4"] = conv_init(keys[3], 3, 3, 16, 4)
    k1, k2 = jax.random.split(keys[4])
    bound = 1.0 / np.sqrt(144.0)
    params["fc"] = (jax.random.uniform(k1, (144, class_num + 1), jnp.float32, -bound, bound),
                    jax.random.uniform(k2, (class_num + 1,), jnp.float32, -bound, bound))
    return params


# ------------------------------ pure-JAX reference ---------------------------

def reference_forward(params, x_nchw):
    x = jnp.transpose(x_nchw, (0, 2, 3, 1))

    def conv(x, w, b, s):
        y = jax.lax.conv_general_dilated(
            x, w, (s, s), "VALID", dimension_numbers=("NHWC", "HWIO", "NHWC"))
        return y + b

    w1, b1 = params["conv1"]
    x = conv(x, w1, b1, 3)
    x = jax.lax.reduce_window(x, -jnp.inf, jax.lax.max,
                              (1, 2, 2, 1), (1, 2, 2, 1), "VALID")
    w2, b2 = params["conv2"]
    x = conv(x, w2, b2, 3)
    w3, b3 = params["conv3"]
    x = conv(x, w3, b3, 1)
    gamma, beta, rmean, rvar = params["bn3"]
    x = (x - rmean) / jnp.sqrt(rvar + 1e-5) * gamma + beta
    w4, b4 = params["conv4"]
    x = conv(x, w4, b4, 1)
    x = jnp.transpose(x, (0, 3, 1, 2)).reshape(x.shape[0], -1)   # NCHW flatten
    wf, bf = params["fc"]
    return jax.nn.softmax(x @ wf + bf, axis=-1)


# ----------------------------------- main ------------------------------------

if __name__ == "__main__":
    class_num = 9                      # classifier outputs class_num + 1 = 10
    key = jax.random.PRNGKey(0)
    k_param, k_x = jax.random.split(key)
    params = init_params(k_param, class_num)

    # Input spatial size is fixed to 180x180 by Linear(144, ...); small batch of 2.
    x = jax.random.normal(k_x, (2, 3, 180, 180), jnp.float32)

    out = jax.block_until_ready(testmodel_forward(params, x))
    ref = jax.block_until_ready(reference_forward(params, x))

    assert out.shape == (2, class_num + 1), out.shape
    assert np.all(np.isfinite(np.asarray(out)))
    np.testing.assert_allclose(np.asarray(out).sum(axis=-1), 1.0, atol=1e-5)
    np.testing.assert_allclose(np.asarray(out), np.asarray(ref), rtol=1e-3, atol=1e-5)
    print("KERNEL_OK")
</pallas_src>

<mosaic_0001>
module attributes {stable_mosaic.version = 11 : i64} {
  func.func @_fused_forward_kernel(%arg0: i32, %arg1: memref<1x4x243x100xf32, #tpu.memory_space<vmem>>, %arg2: memref<72x243xf32, #tpu.memory_space<vmem>>, %arg3: memref<16x72xf32, #tpu.memory_space<vmem>>, %arg4: memref<16x144xf32, #tpu.memory_space<vmem>>, %arg5: memref<16x1xf32, #tpu.memory_space<vmem>>, %arg6: memref<16x1xf32, #tpu.memory_space<vmem>>, %arg7: memref<4x144xf32, #tpu.memory_space<vmem>>, %arg8: memref<56x40xf32, #tpu.memory_space<vmem>>, %arg9: memref<1x10xf32, #tpu.memory_space<vmem>>, %arg10: memref<1x1x10xf32, #tpu.memory_space<vmem>>) attributes {dimension_semantics = [#tpu.dimension_semantics<parallel>], iteration_bounds = array<i64: 2>, scalar_prefetch = 0 : i64, scratch_operands = 0 : i64, tpu.core_type = #tpu.core_type<tc>, window_params = [{transform_indices = @transform_0, window_bounds = array<i64: 1, 4, 243, 100>}, {pipeline_mode = #tpu.pipeline_mode<synchronous>, transform_indices = @transform_1, window_bounds = array<i64: 72, 243>}, {pipeline_mode = #tpu.pipeline_mode<synchronous>, transform_indices = @transform_2, window_bounds = array<i64: 16, 72>}, {pipeline_mode = #tpu.pipeline_mode<synchronous>, transform_indices = @transform_3, window_bounds = array<i64: 16, 144>}, {pipeline_mode = #tpu.pipeline_mode<synchronous>, transform_indices = @transform_4, window_bounds = array<i64: 16, 1>}, {pipeline_mode = #tpu.pipeline_mode<synchronous>, transform_indices = @transform_5, window_bounds = array<i64: 16, 1>}, {pipeline_mode = #tpu.pipeline_mode<synchronous>, transform_indices = @transform_6, window_bounds = array<i64: 4, 144>}, {pipeline_mode = #tpu.pipeline_mode<synchronous>, transform_indices = @transform_7, window_bounds = array<i64: 56, 40>}, {pipeline_mode = #tpu.pipeline_mode<synchronous>, transform_indices = @transform_8, window_bounds = array<i64: 1, 10>}, {transform_indices = @transform_9, window_bounds = array<i64: 1, 1, 10>}]} {
    %c0 = arith.constant 0 : index
    %c0_0 = arith.constant 0 : index
    %0 = vector.load %arg2[%c0, %c0_0] : memref<72x243xf32, #tpu.memory_space<vmem>>, vector<72x243xf32>
    %c0_1 = arith.constant 0 : index
    %c0_2 = arith.constant 0 : index
    %c0_3 = arith.constant 0 : index
    %c0_4 = arith.constant 0 : index
    %1 = vector.load %arg1[%c0_1, %c0_2, %c0_3, %c0_4] : memref<1x4x243x100xf32, #tpu.memory_space<vmem>>, vector<1x1x243x100xf32>
    %2 = vector.shape_cast %1 : vector<1x1x243x100xf32> to vector<243x100xf32>
    %cst = arith.constant dense<0.000000e+00> : vector<72x100xf32>
    %3 = tpu.matmul %0, %2, %cst {dimension_numbers = #tpu.dot_dimension_numbers<[1], [0], [0], [1], [0, 0, 1, 1], [], []>} : vector<72x243xf32>, vector<243x100xf32>, vector<72x100xf32> -> vector<72x100xf32>
    %c0_5 = arith.constant 0 : index
    %c1 = arith.constant 1 : index
    %c0_6 = arith.constant 0 : index
    %c0_7 = arith.constant 0 : index
    %4 = vector.load %arg1[%c0_5, %c1, %c0_6, %c0_7] : memref<1x4x243x100xf32, #tpu.memory_space<vmem>>, vector<1x1x243x100xf32>
    %5 = vector.shape_cast %4 : vector<1x1x243x100xf32> to vector<243x100xf32>
    %cst_8 = arith.constant dense<0.000000e+00> : vector<72x100xf32>
    %6 = tpu.matmul %0, %5, %cst_8 {dimension_numbers = #tpu.dot_dimension_numbers<[1], [0], [0], [1], [0, 0, 1, 1], [], []>} : vector<72x243xf32>, vector<243x100xf32>, vector<72x100xf32> -> vector<72x100xf32>
    %c0_9 = arith.constant 0 : index
    %c2 = arith.constant 2 : index
    %c0_10 = arith.constant 0 : index
    %c0_11 = arith.constant 0 : index
    %7 = vector.load %arg1[%c0_9, %c2, %c0_10, %c0_11] : memref<1x4x243x100xf32, #tpu.memory_space<vmem>>, vector<1x1x243x100xf32>
    %8 = vector.shape_cast %7 : vector<1x1x243x100xf32> to vector<243x100xf32>
    %cst_12 = arith.constant dense<0.000000e+00> : vector<72x100xf32>
    %9 = tpu.matmul %0, %8, %cst_12 {dimension_numbers = #tpu.dot_dimension_numbers<[1], [0], [0], [1], [0, 0, 1, 1], [], []>} : vector<72x243xf32>, vector<243x100xf32>, vector<72x100xf32> -> vector<72x100xf32>
    %c0_13 = arith.constant 0 : index
    %c3 = arith.constant 3 : index
    %c0_14 = arith.constant 0 : index
    %c0_15 = arith.constant 0 : index
    %10 = vector.load %arg1[%c0_13, %c3, %c0_14, %c0_15] : memref<1x4x243x100xf32, #tpu.memory_space<vmem>>, vector<1x1x243x100xf32>
    %11 = vector.shape_cast %10 : vector<1x1x243x100xf32> to vector<243x100xf32>
    %cst_16 = arith.constant dense<0.000000e+00> : vector<72x100xf32>
    %12 = tpu.matmul %0, %11, %cst_16 {dimension_numbers = #tpu.dot_dimension_numbers<[1], [0], [0], [1], [0, 0, 1, 1], [], []>} : vector<72x243xf32>, vector<243x100xf32>, vector<72x100xf32> -> vector<72x100xf32>
    %13 = arith.maximumf %3, %6 : vector<72x100xf32>
    %14 = arith.maximumf %9, %12 : vector<72x100xf32>
    %15 = arith.maximumf %13, %14 : vector<72x100xf32>
    %c0_17 = arith.constant 0 : index
    %c0_18 = arith.constant 0 : index
    %16 = vector.load %arg3[%c0_17, %c0_18] : memref<16x72xf32, #tpu.memory_space<vmem>>, vector<16x72xf32>
    %cst_19 = arith.constant dense<0.000000e+00> : vector<16x100xf32>
    %17 = tpu.matmul %16, %15, %cst_19 {dimension_numbers = #tpu.dot_dimension_numbers<[1], [0], [0], [1], [0, 0, 1, 1], [], []>} : vector<16x72xf32>, vector<72x100xf32>, vector<16x100xf32> -> vector<16x100xf32>
    %18 = vector.extract_strided_slice %17 {offsets = [0, 0], sizes = [16, 78], strides = [1, 1]} : vector<16x100xf32> to vector<16x78xf32>
    %19 = vector.extract_strided_slice %17 {offsets = [0, 1], sizes = [16, 78], strides = [1, 1]} : vector<16x100xf32> to vector<16x78xf32>
    %20 = vector.extract_strided_slice %17 {offsets = [0, 2], sizes = [16, 78], strides = [1, 1]} : vector<16x100xf32> to vector<16x78xf32>
    %21 = vector.extract_strided_slice %17 {offsets = [0, 10], sizes = [16, 78], strides = [1, 1]} : vector<16x100xf32> to vector<16x78xf32>
    %22 = vector.extract_strided_slice %17 {offsets = [0, 11], sizes = [16, 78], strides = [1, 1]} : vector<16x100xf32> to vector<16x78xf32>
    %23 = vector.extract_strided_slice %17 {offsets = [0, 12], sizes = [16, 78], strides = [1, 1]} : vector<16x100xf32> to vector<16x78xf32>
    %24 = vector.extract_strided_slice %17 {offsets = [0, 20], sizes = [16, 78], strides = [1, 1]} : vector<16x100xf32> to vector<16x78xf32>
    %25 = vector.extract_strided_slice %17 {offsets = [0, 21], sizes = [16, 78], strides = [1, 1]} : vector<16x100xf32> to vector<16x78xf32>
    %26 = vector.extract_strided_slice %17 {offsets = [0, 22], sizes = [16, 78], strides = [1, 1]} : vector<16x100xf32> to vector<16x78xf32>
    %27 = tpu.concatenate %18, %19, %20, %21, %22, %23, %24, %25, %26 in 0 : vector<16x78xf32>, vector<16x78xf32>, vector<16x78xf32>, vector<16x78xf32>, vector<16x78xf32>, vector<16x78xf32>, vector<16x78xf32>, vector<16x78xf32>, vector<16x78xf32> -> vector<144x78xf32>
    %c0_20 = arith.constant 0 : index
    %c0_21 = arith.constant 0 : index
    %28 = vector.load %arg4[%c0_20, %c0_21] : memref<16x144xf32, #tpu.memory_space<vmem>>, vector<16x144xf32>
    %cst_22 = arith.constant dense<0.000000e+00> : vector<16x78xf32>
    %29 = tpu.matmul %28, %27, %cst_22 {dimension_numbers = #tpu.dot_dimension_numbers<[1], [0], [0], [1], [0, 0, 1, 1], [], []>} : vector<16x144xf32>, vector<144x78xf32>, vector<16x78xf32> -> vector<16x78xf32>
    %c0_23 = arith.constant 0 : index
    %c0_24 = arith.constant 0 : index
    %30 = vector.load %arg5[%c0_23, %c0_24] : memref<16x1xf32, #tpu.memory_space<vmem>>, vector<16x1xf32>
    %31 = vector.broadcast %30 : vector<16x1xf32> to vector<16x78xf32>
    %32 = arith.mulf %29, %31 : vector<16x78xf32>
    %c0_25 = arith.constant 0 : index
    %c0_26 = arith.constant 0 : index
    %33 = vector.load %arg6[%c0_25, %c0_26] : memref<16x1xf32, #tpu.memory_space<vmem>>, vector<16x1xf32>
    %34 = vector.broadcast %33 : vector<16x1xf32> to vector<16x78xf32>
    %35 = arith.addf %32, %34 : vector<16x78xf32>
    %36 = vector.extract_strided_slice %35 {offsets = [0, 0], sizes = [16, 56], strides = [1, 1]} : vector<16x78xf32> to vector<16x56xf32>
    %37 = vector.extract_strided_slice %35 {offsets = [0, 1], sizes = [16, 56], strides = [1, 1]} : vector<16x78xf32> to vector<16x56xf32>
    %38 = vector.extract_strided_slice %35 {offsets = [0, 2], sizes = [16, 56], strides = [1, 1]} : vector<16x78xf32> to vector<16x56xf32>
    %39 = vector.extract_strided_slice %35 {offsets = [0, 10], sizes = [16, 56], strides = [1, 1]} : vector<16x78xf32> to vector<16x56xf32>
    %40 = vector.extract_strided_slice %35 {offsets = [0, 11], sizes = [16, 56], strides = [1, 1]} : vector<16x78xf32> to vector<16x56xf32>
    %41 = vector.extract_strided_slice %35 {offsets = [0, 12], sizes = [16, 56], strides = [1, 1]} : vector<16x78xf32> to vector<16x56xf32>
    %42 = vector.extract_strided_slice %35 {offsets = [0, 20], sizes = [16, 56], strides = [1, 1]} : vector<16x78xf32> to vector<16x56xf32>
    %43 = vector.extract_strided_slice %35 {offsets = [0, 21], sizes = [16, 56], strides = [1, 1]} : vector<16x78xf32> to vector<16x56xf32>
    %44 = vector.extract_strided_slice %35 {offsets = [0, 22], sizes = [16, 56], strides = [1, 1]} : vector<16x78xf32> to vector<16x56xf32>
    %45 = tpu.concatenate %36, %37, %38, %39, %40, %41, %42, %43, %44 in 0 : vector<16x56xf32>, vector<16x56xf32>, vector<16x56xf32>, vector<16x56xf32>, vector<16x56xf32>, vector<16x56xf32>, vector<16x56xf32>, vector<16x56xf32>, vector<16x56xf32> -> vector<144x56xf32>
    %c0_27 = arith.constant 0 : index
    %c0_28 = arith.constant 0 : index
    %46 = vector.load %arg7[%c0_27, %c0_28] : memref<4x144xf32, #tpu.memory_space<vmem>>, vector<4x144xf32>
    %cst_29 = arith.constant dense<0.000000e+00> : vector<4x56xf32>
    %47 = tpu.matmul %46, %45, %cst_29 {dimension_numbers = #tpu.dot_dimension_numbers<[1], [0], [0], [1], [0, 0, 1, 1], [], []>} : vector<4x144xf32>, vector<144x56xf32>, vector<4x56xf32> -> vector<4x56xf32>
    %c0_30 = arith.constant 0 : index
    %c0_31 = arith.constant 0 : index
    %48 = vector.load %arg8[%c0_30, %c0_31] : memref<56x40xf32, #tpu.memory_space<vmem>>, vector<56x40xf32>
    %cst_32 = arith.constant dense<0.000000e+00> : vector<4x40xf32>
    %49 = tpu.matmul %47, %48, %cst_32 {dimension_numbers = #tpu.dot_dimension_numbers<[1], [0], [0], [1], [0, 0, 1, 1], [], []>} : vector<4x56xf32>, vector<56x40xf32>, vector<4x40xf32> -> vector<4x40xf32>
    %c0_33 = arith.constant 0 : index
    %c0_34 = arith.constant 0 : index
    %50 = vector.load %arg9[%c0_33, %c0_34] : memref<1x10xf32, #tpu.memory_space<vmem>>, vector<1x10xf32>
    %51 = vector.extract_strided_slice %49 {offsets = [0, 0], sizes = [1, 10], strides = [1, 1]} : vector<4x40xf32> to vector<1x10xf32>
    %52 = vector.extract_strided_slice %49 {offsets = [1, 10], sizes = [1, 10], strides = [1, 1]} : vector<4x40xf32> to vector<1x10xf32>
    %53 = arith.addf %51, %52 : vector<1x10xf32>
    %54 = vector.extract_strided_slice %49 {offsets = [2, 20], sizes = [1, 10], strides = [1, 1]} : vector<4x40xf32> to vector<1x10xf32>
    %55 = vector.extract_strided_slice %49 {offsets = [3, 30], sizes = [1, 10], strides = [1, 1]} : vector<4x40xf32> to vector<1x10xf32>
    %56 = arith.addf %54, %55 : vector<1x10xf32>
    %57 = arith.addf %53, %56 : vector<1x10xf32>
    %58 = arith.addf %50, %57 : vector<1x10xf32>
    %cst_35 = arith.constant dense<0xFF800000> : vector<1xf32>
    %59 = vector.multi_reduction <maximumf>, %58, %cst_35 [1] : vector<1x10xf32> to vector<1xf32>
    %60 = vector.shape_cast %59 : vector<1xf32> to vector<1x1xf32>
    %61 = vector.broadcast %60 : vector<1x1xf32> to vector<1x10xf32>
    %62 = arith.subf %58, %61 : vector<1x10xf32>
    %63 = math.exp %62 : vector<1x10xf32>
    %cst_36 = arith.constant dense<0.000000e+00> : vector<1xf32>
    %64 = vector.multi_reduction <add>, %63, %cst_36 [1] : vector<1x10xf32> to vector<1xf32>
    %65 = vector.shape_cast %64 : vector<1xf32> to vector<1x1xf32>
    %66 = vector.broadcast %65 : vector<1x1xf32> to vector<1x10xf32>
    %67 = arith.divf %63, %66 : vector<1x10xf32>
    %c0_37 = arith.constant 0 : index
    %c0_38 = arith.constant 0 : index
    %c0_39 = arith.constant 0 : index
    %68 = vector.load %arg10[%c0_37, %c0_38, %c0_39] : memref<1x1x10xf32, #tpu.memory_space<vmem>>, vector<1x1x10xf32>
    %69 = vector.shape_cast %68 : vector<1x1x10xf32> to vector<1x10xf32>
    %70 = vector.shape_cast %67 : vector<1x10xf32> to vector<1x1x10xf32>
    tpu.vector_store %arg10[%c0_37, %c0_38, %c0_39], %70 {strides = array<i32>} : memref<1x1x10xf32, #tpu.memory_space<vmem>>, vector<1x1x10xf32>,
    return
  }
  func.func @transform_0(%arg0: i32) -> (i32, i32, i32, i32) {
    %c0_i32 = arith.constant 0 : i32
    %c0_i32_0 = arith.constant 0 : i32
    %c0_i32_1 = arith.constant 0 : i32
    %c0_i32_2 = arith.constant 0 : i32
    return %arg0, %c0_i32, %c0_i32_0, %c0_i32_1 : i32, i32, i32, i32
  }
  func.func @transform_1(%arg0: i32) -> (i32, i32) {
    %c0_i32 = arith.constant 0 : i32
    %c0_i32_0 = arith.constant 0 : i32
    %c0_i32_1 = arith.constant 0 : i32
    return %c0_i32, %c0_i32_0 : i32, i32
  }
  func.func @transform_2(%arg0: i32) -> (i32, i32) {
    %c0_i32 = arith.constant 0 : i32
    %c0_i32_0 = arith.constant 0 : i32
    %c0_i32_1 = arith.constant 0 : i32
    return %c0_i32, %c0_i32_0 : i32, i32
  }
  func.func @transform_3(%arg0: i32) -> (i32, i32) {
    %c0_i32 = arith.constant 0 : i32
    %c0_i32_0 = arith.constant 0 : i32
    %c0_i32_1 = arith.constant 0 : i32
    return %c0_i32, %c0_i32_0 : i32, i32
  }
  func.func @transform_4(%arg0: i32) -> (i32, i32) {
    %c0_i32 = arith.constant 0 : i32
    %c0_i32_0 = arith.constant 0 : i32
    %c0_i32_1 = arith.constant 0 : i32
    return %c0_i32, %c0_i32_0 : i32, i32
  }
  func.func @transform_5(%arg0: i32) -> (i32, i32) {
    %c0_i32 = arith.constant 0 : i32
    %c0_i32_0 = arith.constant 0 : i32
    %c0_i32_1 = arith.constant 0 : i32
    return %c0_i32, %c0_i32_0 : i32, i32
  }
  func.func @transform_6(%arg0: i32) -> (i32, i32) {
    %c0_i32 = arith.constant 0 : i32
    %c0_i32_0 = arith.constant 0 : i32
    %c0_i32_1 = arith.constant 0 : i32
    return %c0_i32, %c0_i32_0 : i32, i32
  }
  func.func @transform_7(%arg0: i32) -> (i32, i32) {
    %c0_i32 = arith.constant 0 : i32
    %c0_i32_0 = arith.constant 0 : i32
    %c0_i32_1 = arith.constant 0 : i32
    return %c0_i32, %c0_i32_0 : i32, i32
  }
  func.func @transform_8(%arg0: i32) -> (i32, i32) {
    %c0_i32 = arith.constant 0 : i32
    %c0_i32_0 = arith.constant 0 : i32
    %c0_i32_1 = arith.constant 0 : i32
    return %c0_i32, %c0_i32_0 : i32, i32
  }
  func.func @transform_9(%arg0: i32) -> (i32, i32, i32) {
    %c0_i32 = arith.constant 0 : i32
    %c0_i32_0 = arith.constant 0 : i32
    %c0_i32_1 = arith.constant 0 : i32
    return %arg0, %c0_i32, %c0_i32_0 : i32, i32, i32
  }
}

</mosaic_0001>

<llo_original>
// kernel: testmodel_forward.1
$region0: #{testmodel_forward.1}
  #allocation0 [shape = 'u32[]', space=smem, size = 0x4, offset = 0x4, fixed_abs, tag = 'smem constant byte address 0x4 - core index']
  #allocation1 [shape = 'u32[144,128]{1,0:T(1,128)}', space=vmem, size = 0x12000, scoped, tag = 'internal scratch']
  %s0 = inlined_call_operand.vmem [shape: f32[2,4,243,100], index: 0, kind: input, shape index: {}]
  %s1 = inlined_call_operand.vmem [shape: f32[72,243], index: 1, kind: input, shape index: {}]
  %s2 = inlined_call_operand.vmem [shape: f32[16,72], index: 2, kind: input, shape index: {}]
  %s3 = inlined_call_operand.vmem [shape: f32[16,144], index: 3, kind: input, shape index: {}]
  %s4 = inlined_call_operand.vmem [shape: f32[16,1], index: 4, kind: input, shape index: {}]
  %s5 = inlined_call_operand.vmem [shape: f32[16,1], index: 5, kind: input, shape index: {}]
  %s6 = inlined_call_operand.vmem [shape: f32[4,144], index: 6, kind: input, shape index: {}]
  %s7 = inlined_call_operand.vmem [shape: f32[56,40], index: 7, kind: input, shape index: {}]
  %s8 = inlined_call_operand.vmem [shape: f32[1,10], index: 8, kind: input, shape index: {}]
  %s9 = inlined_call_operand.hbm [shape: f32[2,1,10], index: 9, kind: output, shape index: {}]
  %s10 = sld [smem:[#allocation0]]
  $region69: #{testmodel_forward.1} parent=0
    _
  %s12 = ssub.s32 1, %s10
  %s13 = scalar_select 0, %s12, %s10
  $region1: #{testmodel_forward.1} parent=0
    #allocation2 [shape = 'u8[1024]{0}', space=vmem, size = 0x400, scoped, tag = 'output window, operand 0']
    #allocation3 [shape = 's32[2]{0}', space=sflag, size = 0x8, scoped, tag = 'scoped memory for testmodel_forward.1']
    %14 = vsyncpa [#allocation3], 0
    %s15 = scalar_lea.sflag [#allocation3], 1
    %16 = vsyncpa %s15, 0
    loop: start=0, step=1, limit=4
    $region2: #{testmodel_forward.1} parent=1 // loop_pre_header
      _
    $region3: #{testmodel_forward.1} parent=1 // loop_header
      %s18 = sphi 0, %s22
      %p19 = scmp.ge.s32.totalorder %s18, 4
      %s28 = sphi 0, %s30
      %s31 = sphi 0, %s28
      %s32 = sphi 0, %s31
      %s48 = sphi 0, %s32
      %s52 = sphi 0, %s52
      %s54 = sphi 0, %s52
      %s55 = sphi 0, %s54
      %s69 = sphi 0, %s55
      %s73 = sphi 0, %s73
      %s75 = sphi 0, %s73
      %s76 = sphi 0, %s75
      %s90 = sphi 0, %s76
      %s94 = sphi 0, %s94
      %s96 = sphi 0, %s94
      %s97 = sphi 0, %s96
      %s111 = sphi 0, %s97
      %s115 = sphi 0, %s115
      %s117 = sphi 0, %s115
      %s118 = sphi 0, %s117
      %s132 = sphi 0, %s118
      %s136 = sphi 0, %s136
      %s138 = sphi 0, %s136
      %s139 = sphi 0, %s138
      %s153 = sphi 0, %s139
      %s157 = sphi 0, %s157
      %s159 = sphi 0, %s157
      %s160 = sphi 0, %s159
      %s174 = sphi 0, %s160
      %s178 = sphi 0, %s178
      %s180 = sphi 0, %s178
      %s181 = sphi 0, %s180
      %s195 = sphi 0, %s181
      %s199 = sphi 0, %s199
      %s201 = sphi 0, %s199
      %s202 = sphi 0, %s201
      %s216 = sphi 0, %s202
      %s222 = sphi 0, %s224
      %s225 = sphi 0, %s222
      %s226 = sphi 0, %s225
      %s242 = sphi 0, %s226
    $region4: #{testmodel_forward.1} parent=1 // loop_header_branch
      %21 = sbr.rel (%p19) target = $region8
    $region5: #{testmodel_forward.1} parent=1 // loop_body
      %s23 = ssub.s32 %s18, 1
      %s24 = ssub.s32 %s18, 2
      %s25 = sadd.s32 %s18, 1
      %s26 = ssub.s32 %s18, %s25
      %p27 = scmp.eq.s32.totalorder %s26, 0
      %s29 = sadd.s32 %s28, 1
      %s30 = scalar_select %p27, %s28, %s29
      %p33 = pneg %p27
      %p34 = scmp.eq.s32.totalorder %s18, 1
      %p35 = por %p33, %p34
      %p36 = scmp.ne.s32.totalorder %s28, %s31
      %p37 = scmp.eq.s32.totalorder %s18, 0
      %p38 = por %p36, %p37
      %p39 = scmp.ne.s32.totalorder %s28, %s31
      %p40 = scmp.eq.s32.totalorder %s23, 1
      %p41 = por %p39, %p40
      %p42 = scmp.ne.s32.totalorder %s31, %s32
      %p43 = scmp.eq.s32.totalorder %s23, 0
      %p44 = por %p42, %p43
      %p45 = scmp.ne.s32.totalorder %s31, %s32
      %p46 = scmp.eq.s32.totalorder %s24, 1
      %p47 = por %p45, %p46
      %p49 = scmp.ne.s32.totalorder %s32, %s48
      %p50 = scmp.eq.s32.totalorder %s24, 0
      %p51 = por %p49, %p50
      %s53 = sadd.s32 %s52, 1
      %p56 = scmp.eq.s32.totalorder %s18, 1
      %p57 = scmp.ne.s32.totalorder %s52, %s54
      %p58 = scmp.eq.s32.totalorder %s18, 0
      %p59 = por %p57, %p58
      %p60 = scmp.ne.s32.totalorder %s52, %s54
      %p61 = scmp.eq.s32.totalorder %s23, 1
      %p62 = por %p60, %p61
      %p63 = scmp.ne.s32.totalorder %s54, %s55
      %p64 = scmp.eq.s32.totalorder %s23, 0
      %p65 = por %p63, %p64
      %p66 = scmp.ne.s32.totalorder %s54, %s55
      %p67 = scmp.eq.s32.totalorder %s24, 1
      %p68 = por %p66, %p67
      %p70 = scmp.ne.s32.totalorder %s55, %s69
      %p71 = scmp.eq.s32.totalorder %s24, 0
      %p72 = por %p70, %p71
      %s74 = sadd.s32 %s73, 1
      %p77 = scmp.eq.s32.totalorder %s18, 1
      %p78 = scmp.ne.s32.totalorder %s73, %s75
      %p79 = scmp.eq.s32.totalorder %s18, 0
      %p80 = por %p78, %p79
      %p81 = scmp.ne.s32.totalorder %s73, %s75
      %p82 = scmp.eq.s32.totalorder %s23, 1
      %p83 = por %p81, %p82
      %p84 = scmp.ne.s32.totalorder %s75, %s76
      %p85 = scmp.eq.s32.totalorder %s23, 0
      %p86 = por %p84, %p85
      %p87 = scmp.ne.s32.totalorder %s75, %s76
      %p88 = scmp.eq.s32.totalorder %s24, 1
      %p89 = por %p87, %p88
      %p91 = scmp.ne.s32.totalorder %s76, %s90
      %p92 = scmp.eq.s32.totalorder %s24, 0
      %p93 = por %p91, %p92
      %s95 = sadd.s32 %s94, 1
      %p98 = scmp.eq.s32.totalorder %s18, 1
      %p99 = scmp.ne.s32.totalorder %s94, %s96
      %p100 = scmp.eq.s32.totalorder %s18, 0
      %p101 = por %p99, %p100
      %p102 = scmp.ne.s32.totalorder %s94, %s96
      %p103 = scmp.eq.s32.totalorder %s23, 1
      %p104 = por %p102, %p103
      %p105 = scmp.ne.s32.totalorder %s96, %s97
      %p106 = scmp.eq.s32.totalorder %s23, 0
      %p107 = por %p105, %p106
      %p108 = scmp.ne.s32.totalorder %s96, %s97
      %p109 = scmp.eq.s32.totalorder %s24, 1
      %p110 = por %p108, %p109
      %p112 = scmp.ne.s32.totalorder %s97, %s111
      %p113 = scmp.eq.s32.totalorder %s24, 0
      %p114 = por %p112, %p113
      %s116 = sadd.s32 %s115, 1
      %p119 = scmp.eq.s32.totalorder %s18, 1
      %p120 = scmp.ne.s32.totalorder %s115, %s117
      %p121 = scmp.eq.s32.totalorder %s18, 0
      %p122 = por %p120, %p121
      %p123 = scmp.ne.s32.totalorder %s115, %s117
      %p124 = scmp.eq.s32.totalorder %s23, 1
      %p125 = por %p123, %p124
      %p126 = scmp.ne.s32.totalorder %s117, %s118
      %p127 = scmp.eq.s32.totalorder %s23, 0
      %p128 = por %p126, %p127
      %p129 = scmp.ne.s32.totalorder %s117, %s118
      %p130 = scmp.eq.s32.totalorder %s24, 1
      %p131 = por %p129, %p130
      %p133 = scmp.ne.s32.totalorder %s118, %s132
      %p134 = scmp.eq.s32.totalorder %s24, 0
      %p135 = por %p133, %p134
      %s137 = sadd.s32 %s136, 1
      %p140 = scmp.eq.s32.totalorder %s18, 1
      %p141 = scmp.ne.s32.totalorder %s136, %s138
      %p142 = scmp.eq.s32.totalorder %s18, 0
      %p143 = por %p141, %p142
      %p144 = scmp.ne.s32.totalorder %s136, %s138
      %p145 = scmp.eq.s32.totalorder %s23, 1
      %p146 = por %p144, %p145
      %p147 = scmp.ne.s32.totalorder %s138, %s139
      %p148 = scmp.eq.s32.totalorder %s23, 0
      %p149 = por %p147, %p148
      %p150 = scmp.ne.s32.totalorder %s138, %s139
      %p151 = scmp.eq.s32.totalorder %s24, 1
      %p152 = por %p150, %p151
      %p154 = scmp.ne.s32.totalorder %s139, %s153
      %p155 = scmp.eq.s32.totalorder %s24, 0
      %p156 = por %p154, %p155
      %s158 = sadd.s32 %s157, 1
      %p161 = scmp.eq.s32.totalorder %s18, 1
      %p162 = scmp.ne.s32.totalorder %s157, %s159
      %p163 = scmp.eq.s32.totalorder %s18, 0
      %p164 = por %p162, %p163
      %p165 = scmp.ne.s32.totalorder %s157, %s159
      %p166 = scmp.eq.s32.totalorder %s23, 1
      %p167 = por %p165, %p166
      %p168 = scmp.ne.s32.totalorder %s159, %s160
      %p169 = scmp.eq.s32.totalorder %s23, 0
      %p170 = por %p168, %p169
      %p171 = scmp.ne.s32.totalorder %s159, %s160
      %p172 = scmp.eq.s32.totalorder %s24, 1
      %p173 = por %p171, %p172
      %p175 = scmp.ne.s32.totalorder %s160, %s174
      %p176 = scmp.eq.s32.totalorder %s24, 0
      %p177 = por %p175, %p176
      %s179 = sadd.s32 %s178, 1
      %p182 = scmp.eq.s32.totalorder %s18, 1
      %p183 = scmp.ne.s32.totalorder %s178, %s180
      %p184 = scmp.eq.s32.totalorder %s18, 0
      %p185 = por %p183, %p184
      %p186 = scmp.ne.s32.totalorder %s178, %s180
      %p187 = scmp.eq.s32.totalorder %s23, 1
      %p188 = por %p186, %p187
      %p189 = scmp.ne.s32.totalorder %s180, %s181
      %p190 = scmp.eq.s32.totalorder %s23, 0
      %p191 = por %p189, %p190
      %p192 = scmp.ne.s32.totalorder %s180, %s181
      %p193 = scmp.eq.s32.totalorder %s24, 1
      %p194 = por %p192, %p193
      %p196 = scmp.ne.s32.totalorder %s181, %s195
      %p197 = scmp.eq.s32.totalorder %s24, 0
      %p198 = por %p196, %p197
      %s200 = sadd.s32 %s199, 1
      %p203 = scmp.eq.s32.totalorder %s18, 1
      %p204 = scmp.ne.s32.totalorder %s199, %s201
      %p205 = scmp.eq.s32.totalorder %s18, 0
      %p206 = por %p204, %p205
      %p207 = scmp.ne.s32.totalorder %s199, %s201
      %p208 = scmp.eq.s32.totalorder %s23, 1
      %p209 = por %p207, %p208
      %p210 = scmp.ne.s32.totalorder %s201, %s202
      %p211 = scmp.eq.s32.totalorder %s23, 0
      %p212 = por %p210, %p211
      %p213 = scmp.ne.s32.totalorder %s201, %s202
      %p214 = scmp.eq.s32.totalorder %s24, 1
      %p215 = por %p213, %p214
      %p217 = scmp.ne.s32.totalorder %s202, %s216
      %p218 = scmp.eq.s32.totalorder %s24, 0
      %p219 = por %p217, %p218
      %s220 = ssub.s32 %s18, %s25
      %p221 = scmp.eq.s32.totalorder %s220, 0
      %s223 = sadd.s32 %s222, 1
      %s224 = scalar_select %p221, %s222, %s223
      %p227 = pneg %p221
      %p228 = scmp.eq.s32.totalorder %s18, 1
      %p229 = por %p227, %p228
      %p230 = scmp.ne.s32.totalorder %s222, %s225
      %p231 = scmp.eq.s32.totalorder %s18, 0
      %p232 = por %p230, %p231
      %p233 = scmp.ne.s32.totalorder %s222, %s225
      %p234 = scmp.eq.s32.totalorder %s23, 1
      %p235 = por %p233, %p234
      %p236 = scmp.ne.s32.totalorder %s225, %s226
      %p237 = scmp.eq.s32.totalorder %s23, 0
      %p238 = por %p236, %p237
      %p239 = scmp.ne.s32.totalorder %s225, %s226
      %p240 = scmp.eq.s32.totalorder %s24, 1
      %p241 = por %p239, %p240
      %p243 = scmp.ne.s32.totalorder %s226, %s242
      %p244 = scmp.eq.s32.totalorder %s24, 0
      %p245 = por %p243, %p244
      %p246 = scmp.le.s32.totalorder 1, %s18
      %p247 = scmp.lt.s32.totalorder %s18, 3
      %p248 = pnand %p246, %p247
      %p249 = pneg %p248
      // Predicated region
      $region9: #{testmodel_forward.1} parent=5 // pred_check
        _
      $region10: #{testmodel_forward.1} parent=5 // pred_check_branch
        %251 = sbr.rel (%p248) target = $region12
      $region11: #{testmodel_forward.1} parent=5 // pred_region
        %s252 = ssub.s32 %s18, 1
        // Predicated region
        $region13: #{testmodel_forward.1} parent=11 // pred_check
          %p253 = pneg %p65
        $region14: #{testmodel_forward.1} parent=11 // pred_check_branch
          %255 = sbr.rel (%p253) target = $region16
        $region15: #{testmodel_forward.1} parent=11 // pred_region
          _
        $region16: #{testmodel_forward.1} parent=11 // pred_fallthru
          _
        // Predicated region
        $region17: #{testmodel_forward.1} parent=11 // pred_check
          %p256 = pneg %p86
        $region18: #{testmodel_forward.1} parent=11 // pred_check_branch
          %258 = sbr.rel (%p256) target = $region20
        $region19: #{testmodel_forward.1} parent=11 // pred_region
          _
        $region20: #{testmodel_forward.1} parent=11 // pred_fallthru
          _
        // Predicated region
        $region21: #{testmodel_forward.1} parent=11 // pred_check
          %p259 = pneg %p107
        $region22: #{testmodel_forward.1} parent=11 // pred_check_branch
          %261 = sbr.rel (%p259) target = $region24
        $region23: #{testmodel_forward.1} parent=11 // pred_region
          _
        $region24: #{testmodel_forward.1} parent=11 // pred_fallthru
          _
        // Predicated region
        $region25: #{testmodel_forward.1} parent=11 // pred_check
          %p262 = pneg %p128
        $region26: #{testmodel_forward.1} parent=11 // pred_check_branch
          %264 = sbr.rel (%p262) target = $region28
        $region27: #{testmodel_forward.1} parent=11 // pred_region
          _
        $region28: #{testmodel_forward.1} parent=11 // pred_fallthru
          _
        // Predicated region
        $region29: #{testmodel_forward.1} parent=11 // pred_check
          %p265 = pneg %p149
        $region30: #{testmodel_forward.1} parent=11 // pred_check_branch
          %267 = sbr.rel (%p265) target = $region32
        $region31: #{testmodel_forward.1} parent=11 // pred_region
          _
        $region32: #{testmodel_forward.1} parent=11 // pred_fallthru
          _
        // Predicated region
        $region33: #{testmodel_forward.1} parent=11 // pred_check
          %p268 = pneg %p170
        $region34: #{testmodel_forward.1} parent=11 // pred_check_branch
          %270 = sbr.rel (%p268) target = $region36
        $region35: #{testmodel_forward.1} parent=11 // pred_region
          _
        $region36: #{testmodel_forward.1} parent=11 // pred_fallthru
          _
        // Predicated region
        $region37: #{testmodel_forward.1} parent=11 // pred_check
          %p271 = pneg %p191
        $region38: #{testmodel_forward.1} parent=11 // pred_check_branch
          %273 = sbr.rel (%p271) target = $region40
        $region39: #{testmodel_forward.1} parent=11 // pred_region
          _
        $region40: #{testmodel_forward.1} parent=11 // pred_fallthru
          _
        // Predicated region
        $region41: #{testmodel_forward.1} parent=11 // pred_check
          %p274 = pneg %p212
        $region42: #{testmodel_forward.1} parent=11 // pred_check_branch
          %276 = sbr.rel (%p274) target = $region44
        $region43: #{testmodel_forward.1} parent=11 // pred_region
          _
        $region44: #{testmodel_forward.1} parent=11 // pred_fallthru
          _
      $region12: #{testmodel_forward.1} parent=5 // pred_fallthru
        _
      %p277 = scmp.lt.s32.totalorder %s18, 2
      // Predicated region
      $region45: #{testmodel_forward.1} parent=5 // pred_check
        %p278 = pneg %p277
      $region46: #{testmodel_forward.1} parent=5 // pred_check_branch
        %280 = sbr.rel (%p278) target = $region48
      $region47: #{testmodel_forward.1} parent=5 // pred_region
        // Predicated region
        $region49: #{testmodel_forward.1} parent=47 // pred_check
          %p281 = pneg %p38
        $region50: #{testmodel_forward.1} parent=47 // pred_check_branch
          %283 = sbr.rel (%p281) target = $region52
        $region51: #{testmodel_forward.1} parent=47 // pred_region
          %p284 = scmp.lt.s32.totalorder %s18, 1
          %s285 = scalar_select %p284, %s18, 1
          %s286 = smul.addr %s285, 124
          %s287 = smul.addr %s286, 8
          %s288 = scalar_lea.vmem %s0, %s287
        $region52: #{testmodel_forward.1} parent=47 // pred_fallthru
          _
      $region48: #{testmodel_forward.1} parent=5 // pred_fallthru
        _
      %p289 = scmp.le.s32.totalorder 1, %s18
      %p290 = scmp.lt.s32.totalorder %s18, 3
      %p291 = pnand %p289, %p290
      %p292 = pneg %p291
      // Predicated region
      $region53: #{testmodel_forward.1} parent=5 // pred_check
        _
      $region54: #{testmodel_forward.1} parent=5 // pred_check_branch
        %294 = sbr.rel (%p291) target = $region56
      $region55: #{testmodel_forward.1} parent=5 // pred_region
        %s295 = ssub.s32 %s18, 1
        %p296 = scmp.lt.s32.totalorder %s23, 1
        %s297 = scalar_select %p296, %s23, 1
        %s298 = smul.addr %s297, 124
        %s299 = smul.addr %s298, 8
        %s300 = scalar_lea.vmem %s0, %s299
        %p301 = pneg %p44
        %p302 = pneg %p41
        %p303 = pneg %p65
        %p304 = pneg %p62
        %p305 = pneg %p86
        %p306 = pneg %p83
        %p307 = pneg %p107
        %p308 = pneg %p104
        %p309 = pneg %p128
        %p310 = pneg %p125
        %p311 = pneg %p149
        %p312 = pneg %p146
        %p313 = pneg %p170
        %p314 = pneg %p167
        %p315 = pneg %p191
        %p316 = pneg %p188
        %p317 = pneg %p212
        %p318 = pneg %p209
        %p319 = pneg %p238
        %p320 = pneg %p235
        %s321 = sand.u32 %s225, 1
        %s322 = scalar_lea.sflag [#allocation3], %s321
        %s323 = sand.u32 %s225, 1
        %s324 = scalar_lea.vmem [#allocation2], %s323
        %p325 = scmp.lt.s32.totalorder %s23, 1
        %s326 = scalar_select %p325, %s23, 1
        %s327 = smul.addr %s326, 124
        %s328 = smul.addr %s327, 8
        %s329 = scalar_lea.vmem %s0, %s328
        %v330 = vld [vmem:[%s1] sm:$0xff]
        %v331 = vld [vmem:[%s1 + $0x8] sm:$0xff]
        %v332 = vld [vmem:[%s1 + $0x10] sm:$0xff]
        %v333 = vld [vmem:[%s1 + $0x18] sm:$0xff]
        %v334 = vld [vmem:[%s1 + $0x20] sm:$0xff]
        %v335 = vld [vmem:[%s1 + $0x28] sm:$0xff]
        %v336 = vld [vmem:[%s1 + $0x30] sm:$0xff]
        %v337 = vld [vmem:[%s1 + $0x38] sm:$0xff]
        %v338 = vld [vmem:[%s1 + $0x40] sm:$0xff]
        %v339 = vld [vmem:[%s1 + $0x48] sm:$0xff]
        %v340 = vld [vmem:[%s1 + $0x50] sm:$0xff]
        %v341 = vld [vmem:[%s1 + $0x58] sm:$0xff]
        %v342 = vld [vmem:[%s1 + $0x60] sm:$0xff]
        %v343 = vld [vmem:[%s1 + $0x68] sm:$0xff]
        %v344 = vld [vmem:[%s1 + $0x70] sm:$0xff]
        %v345 = vld [vmem:[%s1 + $0x78] sm:$0xff]
        %v346 = vld [vmem:[%s1 + $0x80] sm:$0xff]
        %v347 = vld [vmem:[%s1 + $0x88] sm:$0xff]
        %v348 = vld [vmem:[%s329] sm:$0xff]
        %v349 = vld [vmem:[%s329 + $0x8] sm:$0xff]
        %v350 = vld [vmem:[%s329 + $0x10] sm:$0xff]
        %v351 = vld [vmem:[%s329 + $0x18] sm:$0xff]
        %v352 = vld [vmem:[%s329 + $0x20] sm:$0xff]
        %v353 = vld [vmem:[%s329 + $0x28] sm:$0xff]
        %v354 = vld [vmem:[%s329 + $0x30] sm:$0xff]
        %v355 = vld [vmem:[%s329 + $0x38] sm:$0xff]
        %v356 = vld [vmem:[%s329 + $0x40] sm:$0xff]
        %v357 = vld [vmem:[%s329 + $0x48] sm:$0xff]
        %v358 = vld [vmem:[%s329 + $0x50] sm:$0xff]
        %v359 = vld [vmem:[%s329 + $0x58] sm:$0xff]
        %v360 = vld [vmem:[%s329 + $0x60] sm:$0xff]
        %v361 = vld [vmem:[%s329 + $0x68] sm:$0xff]
        %v362 = vld [vmem:[%s329 + $0x70] sm:$0xff]
        %v363 = vld [vmem:[%s329 + $0x78] sm:$0xff]
        %v364 = vld [vmem:[%s329 + $0x80] sm:$0xff]
        %v365 = vld [vmem:[%s329 + $0x88] sm:$0xff]
        %v366 = vld [vmem:[%s329 + $0x90] sm:$0xff]
        %v367 = vld [vmem:[%s329 + $0x98] sm:$0xff]
        %v368 = vld [vmem:[%s329 + $0xa0] sm:$0xff]
        %v369 = vld [vmem:[%s329 + $0xa8] sm:$0xff]
        %v370 = vld [vmem:[%s329 + $0xb0] sm:$0xff]
        %v371 = vld [vmem:[%s329 + $0xb8] sm:$0xff]
        %v372 = vld [vmem:[%s329 + $0xc0] sm:$0xff]
        %v373 = vld [vmem:[%s329 + $0xc8] sm:$0xff]
        %v374 = vld [vmem:[%s329 + $0xd0] sm:$0xff]
        %v375 = vld [vmem:[%s329 + $0xd8] sm:$0xff]
        %v376 = vld [vmem:[%s329 + $0xe0] sm:$0xff]
        %v377 = vld [vmem:[%s329 + $0xe8] sm:$0xff]
        %v378 = vld [vmem:[%s329 + $0xf0] sm:$0x7]
        %vm379 = vcmask 941056
        %v381 = vsel %vm379, %v331, 0
        %v384 = vsel %vm379, %v333, 0
        %v387 = vsel %vm379, %v335, 0
        %v390 = vsel %vm379, %v337, 0
        %v393 = vsel %vm379, %v339, 0
        %v396 = vsel %vm379, %v341, 0
        %v399 = vsel %vm379, %v343, 0
        %v402 = vsel %vm379, %v345, 0
        %v405 = vsel %vm379, %v347, 0
        %vm407 = vcmask 1042432
        %v409 = vsel %vm407, %v378, 0
        %411 = vmatprep.subr.mxu0 0.0
        %412 = vmatpush1.msra.mxu0 %v348
        %413 = vmatprep.subr.mxu0 0.0
        %414 = vmatpush1.msra.mxu0 %v349
        %415 = vmatprep.subr.mxu0 0.0
        %416 = vmatpush1.msra.mxu0 %v350
        %417 = vmatprep.subr.mxu0 0.0
        %418 = vmatpush1.msra.mxu0 %v351
        %419 = vmatprep.subr.mxu0 0.0
        %420 = vmatpush1.msra.mxu0 %v352
        %421 = vmatprep.subr.mxu0 0.0
        %422 = vmatpush1.msra.mxu0 %v353
        %423 = vmatprep.subr.mxu0 0.0
        %424 = vmatpush1.msra.mxu0 %v354
        %425 = vmatprep.subr.mxu0 0.0
        %426 = vmatpush1.msra.mxu0 %v355
        %427 = vmatprep.subr.mxu0 0.0
        %428 = vmatpush1.msra.mxu0 %v356
        %429 = vmatprep.subr.mxu0 0.0
        %430 = vmatpush1.msra.mxu0 %v357
        %431 = vmatprep.subr.mxu0 0.0
        %432 = vmatpush1.msra.mxu0 %v358
        %433 = vmatprep.subr.mxu0 0.0
        %434 = vmatpush1.msra.mxu0 %v359
        %435 = vmatprep.subr.mxu0 0.0
        %436 = vmatpush1.msra.mxu0 %v360
        %437 = vmatprep.subr.mxu0 0.0
        %438 = vmatpush1.msra.mxu0 %v361
        %439 = vmatprep.subr.mxu0 0.0
        %440 = vmatpush1.msra.mxu0 %v362
        %441 = vmatprep.subr.mxu0 0.0
        %442 = vmatpush1.msra.mxu0 %v363
        %443 = vmatprep.subr.mxu0 0.0
        %444 = vmatpush1.msra.mxu0 %v364
        %445 = vmatprep.subr.mxu0 0.0
        %446 = vmatpush1.msra.mxu0 %v365
        %447 = vmatprep.subr.mxu0 0.0
        %448 = vmatpush1.msra.mxu0 %v366
        %449 = vmatprep.subr.mxu0 0.0
        %450 = vmatpush1.msra.mxu0 %v367
        %451 = vmatprep.subr.mxu0 0.0
        %452 = vmatpush1.msra.mxu0 %v368
        %453 = vmatprep.subr.mxu0 0.0
        %454 = vmatpush1.msra.mxu0 %v369
        %455 = vmatprep.subr.mxu0 0.0
        %456 = vmatpush1.msra.mxu0 %v370
        %457 = vmatprep.subr.mxu0 0.0
        %458 = vmatpush1.msra.mxu0 %v371
        %459 = vmatprep.subr.mxu0 0.0
        %460 = vmatpush1.msra.mxu0 %v372
        %461 = vmatprep.subr.mxu0 0.0
        %462 = vmatpush1.msra.mxu0 %v373
        %463 = vmatprep.subr.mxu0 0.0
        %464 = vmatpush1.msra.mxu0 %v374
        %465 = vmatprep.subr.mxu0 0.0
        %466 = vmatpush1.msra.mxu0 %v375
        %467 = vmatprep.subr.mxu0 0.0
        %468 = vmatpush1.msra.mxu0 %v376
        %469 = vmatprep.subr.mxu0 0.0
        %470 = vmatpush1.msra.mxu0 %v377
        %471 = vmatprep.subr.mxu0 0.0
        %472 = vmatpush1.msra.mxu0 %v409
        %473 = vmatprep.subr.mxu0 0.0
        %474 = vmatpush1.msra.mxu0 0.0
        %475 = vmatprep.mubr.f32.mxu0 %v381
        %476 = vmatmul.mubr.f32.gmra.mrb[0].mxu0 %v330
        %v477 = vpop.f32.mrb[0].mxu0
        %v478 = vadd.f32 0.0, %v477
        %v479 = vpop.f32.mrb[0].mxu0
        %480 = vmatprep.mubr.f32.mxu0 %v384
        %481 = vmatmul.mubr.f32.gmra.mrb[0].mxu0 %v332
        %v482 = vpop.f32.mrb[0].mxu0
        %v483 = vadd.f32 0.0, %v482
        %v484 = vpop.f32.mrb[0].mxu0
        %485 = vmatprep.mubr.f32.mxu0 %v387
        %486 = vmatmul.mubr.f32.gmra.mrb[0].mxu0 %v334
        %v487 = vpop.f32.mrb[0].mxu0
        %v488 = vadd.f32 0.0, %v487
        %v489 = vpop.f32.mrb[0].mxu0
        %490 = vmatprep.mubr.f32.mxu0 %v390
        %491 = vmatmul.mubr.f32.gmra.mrb[0].mxu0 %v336
        %v492 = vpop.f32.mrb[0].mxu0
        %v493 = vadd.f32 0.0, %v492
        %v494 = vpop.f32.mrb[0].mxu0
        %495 = vmatprep.mubr.f32.mxu0 %v393
        %496 = vmatmul.mubr.f32.gmra.mrb[0].mxu0 %v338
        %v497 = vpop.f32.mrb[0].mxu0
        %v498 = vadd.f32 0.0, %v497
        %v499 = vpop.f32.mrb[0].mxu0
        %500 = vmatprep.mubr.f32.mxu0 %v396
        %501 = vmatmul.mubr.f32.gmra.mrb[0].mxu0 %v340
        %v502 = vpop.f32.mrb[0].mxu0
        %v503 = vadd.f32 0.0, %v502
        %v504 = vpop.f32.mrb[0].mxu0
        %505 = vmatprep.mubr.f32.mxu0 %v399
        %506 = vmatmul.mubr.f32.gmra.mrb[0].mxu0 %v342
        %v507 = vpop.f32.mrb[0].mxu0
        %v508 = vadd.f32 0.0, %v507
        %v509 = vpop.f32.mrb[0].mxu0
        %510 = vmatprep.mubr.f32.mxu0 %v402
        %511 = vmatmul.mubr.f32.gmra.mrb[0].mxu0 %v344
        %v512 = vpop.f32.mrb[0].mxu0
        %v513 = vadd.f32 0.0, %v512
        %v514 = vpop.f32.mrb[0].mxu0
        %515 = vmatprep.mubr.f32.mxu0 %v405
        %516 = vmatmul.mubr.f32.gmra.mrb[0].mxu0 %v346
        %v517 = vpop.f32.mrb[0].mxu0
        %v518 = vadd.f32 0.0, %v517
        %v519 = vpop.f32.mrb[0].mxu0
        %520 = vdwg.mxu0
        %s521 = scalar_lea.vmem %s329, 248
        %v522 = vld [vmem:[%s521] sm:$0xff]
        %v523 = vld [vmem:[%s521 + $0x8] sm:$0xff]
        %v524 = vld [vmem:[%s521 + $0x10] sm:$0xff]
        %v525 = vld [vmem:[%s521 + $0x18] sm:$0xff]
        %v526 = vld [vmem:[%s521 + $0x20] sm:$0xff]
        %v527 = vld [vmem:[%s521 + $0x28] sm:$0xff]
        %v528 = vld [vmem:[%s521 + $0x30] sm:$0xff]
        %v529 = vld [vmem:[%s521 + $0x38] sm:$0xff]
        %v530 = vld [vmem:[%s521 + $0x40] sm:$0xff]
        %v531 = vld [vmem:[%s521 + $0x48] sm:$0xff]
        %v532 = vld [vmem:[%s521 + $0x50] sm:$0xff]
        %v533 = vld [vmem:[%s521 + $0x58] sm:$0xff]
        %v534 = vld [vmem:[%s521 + $0x60] sm:$0xff]
        %v535 = vld [vmem:[%s521 + $0x68] sm:$0xff]
        %v536 = vld [vmem:[%s521 + $0x70] sm:$0xff]
        %v537 = vld [vmem:[%s521 + $0x78] sm:$0xff]
        %v538 = vld [vmem:[%s521 + $0x80] sm:$0xff]
        %v539 = vld [vmem:[%s521 + $0x88] sm:$0xff]
        %v540 = vld [vmem:[%s521 + $0x90] sm:$0xff]
        %v541 = vld [vmem:[%s521 + $0x98] sm:$0xff]
        %v542 = vld [vmem:[%s521 + $0xa0] sm:$0xff]
        %v543 = vld [vmem:[%s521 + $0xa8] sm:$0xff]
        %v544 = vld [vmem:[%s521 + $0xb0] sm:$0xff]
        %v545 = vld [vmem:[%s521 + $0xb8] sm:$0xff]
        %v546 = vld [vmem:[%s521 + $0xc0] sm:$0xff]
        %v547 = vld [vmem:[%s521 + $0xc8] sm:$0xff]
        %v548 = vld [vmem:[%s521 + $0xd0] sm:$0xff]
        %v549 = vld [vmem:[%s521 + $0xd8] sm:$0xff]
        %v550 = vld [vmem:[%s521 + $0xe0] sm:$0xff]
        %v551 = vld [vmem:[%s521 + $0xe8] sm:$0xff]
        %v552 = vld [vmem:[%s521 + $0xf0] sm:$0x7]
        %v554 = vsel %vm407, %v552, 0
        %556 = vmatprep.subr.mxu0 0.0
        %557 = vmatpush1.msra.mxu0 %v522
        %558 = vmatprep.subr.mxu0 0.0
        %559 = vmatpush1.msra.mxu0 %v523
        %560 = vmatprep.subr.mxu0 0.0
        %561 = vmatpush1.msra.mxu0 %v524
        %562 = vmatprep.subr.mxu0 0.0
        %563 = vmatpush1.msra.mxu0 %v525
        %564 = vmatprep.subr.mxu0 0.0
        %565 = vmatpush1.msra.mxu0 %v526
        %566 = vmatprep.subr.mxu0 0.0
        %567 = vmatpush1.msra.mxu0 %v527
        %568 = vmatprep.subr.mxu0 0.0
        %569 = vmatpush1.msra.mxu0 %v528
        %570 = vmatprep.subr.mxu0 0.0
        %571 = vmatpush1.msra.mxu0 %v529
        %572 = vmatprep.subr.mxu0 0.0
        %573 = vmatpush1.msra.mxu0 %v530
        %574 = vmatprep.subr.mxu0 0.0
        %575 = vmatpush1.msra.mxu0 %v531
        %576 = vmatprep.subr.mxu0 0.0
        %577 = vmatpush1.msra.mxu0 %v532
        %578 = vmatprep.subr.mxu0 0.0
        %579 = vmatpush1.msra.mxu0 %v533
        %580 = vmatprep.subr.mxu0 0.0
        %581 = vmatpush1.msra.mxu0 %v534
        %582 = vmatprep.subr.mxu0 0.0
        %583 = vmatpush1.msra.mxu0 %v535
        %584 = vmatprep.subr.mxu0 0.0
        %585 = vmatpush1.msra.mxu0 %v536
        %586 = vmatprep.subr.mxu0 0.0
        %587 = vmatpush1.msra.mxu0 %v537
        %588 = vmatprep.subr.mxu0 0.0
        %589 = vmatpush1.msra.mxu0 %v538
        %590 = vmatprep.subr.mxu0 0.0
        %591 = vmatpush1.msra.mxu0 %v539
        %592 = vmatprep.subr.mxu0 0.0
        %593 = vmatpush1.msra.mxu0 %v540
        %594 = vmatprep.subr.mxu0 0.0
        %595 = vmatpush1.msra.mxu0 %v541
        %596 = vmatprep.subr.mxu0 0.0
        %597 = vmatpush1.msra.mxu0 %v542
        %598 = vmatprep.subr.mxu0 0.0
        %599 = vmatpush1.msra.mxu0 %v543
        %600 = vmatprep.subr.mxu0 0.0
        %601 = vmatpush1.msra.mxu0 %v544
        %602 = vmatprep.subr.mxu0 0.0
        %603 = vmatpush1.msra.mxu0 %v545
        %604 = vmatprep.subr.mxu0 0.0
        %605 = vmatpush1.msra.mxu0 %v546
        %606 = vmatprep.subr.mxu0 0.0
        %607 = vmatpush1.msra.mxu0 %v547
        %608 = vmatprep.subr.mxu0 0.0
        %609 = vmatpush1.msra.mxu0 %v548
        %610 = vmatprep.subr.mxu0 0.0
        %611 = vmatpush1.msra.mxu0 %v549
        %612 = vmatprep.subr.mxu0 0.0
        %613 = vmatpush1.msra.mxu0 %v550
        %614 = vmatprep.subr.mxu0 0.0
        %615 = vmatpush1.msra.mxu0 %v551
        %616 = vmatprep.subr.mxu0 0.0
        %617 = vmatpush1.msra.mxu0 %v554
        %618 = vmatprep.subr.mxu0 0.0
        %619 = vmatpush1.msra.mxu0 0.0
        %620 = vmatprep.mubr.f32.mxu0 %v381
        %621 = vmatmul.mubr.f32.gmra.mrb[0].mxu0 %v330
        %v622 = vpop.f32.mrb[0].mxu0
        %v623 = vadd.f32 0.0, %v622
        %v624 = vpop.f32.mrb[0].mxu0
        %625 = vmatprep.mubr.f32.mxu0 %v384
        %626 = vmatmul.mubr.f32.gmra.mrb[0].mxu0 %v332
        %v627 = vpop.f32.mrb[0].mxu0
        %v628 = vadd.f32 0.0, %v627
        %v629 = vpop.f32.mrb[0].mxu0
        %630 = vmatprep.mubr.f32.mxu0 %v387
        %631 = vmatmul.mubr.f32.gmra.mrb[0].mxu0 %v334
        %v632 = vpop.f32.mrb[0].mxu0
        %v633 = vadd.f32 0.0, %v632
        %v634 = vpop.f32.mrb[0].mxu0
        %635 = vmatprep.mubr.f32.mxu0 %v390
        %636 = vmatmul.mubr.f32.gmra.mrb[0].mxu0 %v336
        %v637 = vpop.f32.mrb[0].mxu0
        %v638 = vadd.f32 0.0, %v637
        %v639 = vpop.f32.mrb[0].mxu0
        %640 = vmatprep.mubr.f32.mxu0 %v393
        %641 = vmatmul.mubr.f32.gmra.mrb[0].mxu0 %v338
        %v642 = vpop.f32.mrb[0].mxu0
        %v643 = vadd.f32 0.0, %v642
        %v644 = vpop.f32.mrb[0].mxu0
        %645 = vmatprep.mubr.f32.mxu0 %v396
        %646 = vmatmul.mubr.f32.gmra.mrb[0].mxu0 %v340
        %v647 = vpop.f32.mrb[0].mxu0
        %v648 = vadd.f32 0.0, %v647
        %v649 = vpop.f32.mrb[0].mxu0
        %650 = vmatprep.mubr.f32.mxu0 %v399
        %651 = vmatmul.mubr.f32.gmra.mrb[0].mxu0 %v342
        %v652 = vpop.f32.mrb[0].mxu0
        %v653 = vadd.f32 0.0, %v652
        %v654 = vpop.f32.mrb[0].mxu0
        %655 = vmatprep.mubr.f32.mxu0 %v402
        %656 = vmatmul.mubr.f32.gmra.mrb[0].mxu0 %v344
        %v657 = vpop.f32.mrb[0].mxu0
        %v658 = vadd.f32 0.0, %v657
        %v659 = vpop.f32.mrb[0].mxu0
        %660 = vmatprep.mubr.f32.mxu0 %v405
        %661 = vmatmul.mubr.f32.gmra.mrb[0].mxu0 %v346
        %v662 = vpop.f32.mrb[0].mxu0
        %v663 = vadd.f32 0.0, %v662
        %v664 = vpop.f32.mrb[0].mxu0
        %665 = vdwg.mxu0
        %s666 = scalar_lea.vmem %s329, 496
        %v667 = vld [vmem:[%s666] sm:$0xff]
        %v668 = vld [vmem:[%s666 + $0x8] sm:$0xff]
        %v669 = vld [vmem:[%s666 + $0x10] sm:$0xff]
        %v670 = vld [vmem:[%s666 + $0x18] sm:$0xff]
        %v671 = vld [vmem:[%s666 + $0x20] sm:$0xff]
        %v672 = vld [vmem:[%s666 + $0x28] sm:$0xff]
        %v673 = vld [vmem:[%s666 + $0x30] sm:$0xff]
        %v674 = vld [vmem:[%s666 + $0x38] sm:$0xff]
        %v675 = vld [vmem:[%s666 + $0x40] sm:$0xff]
        %v676 = vld [vmem:[%s666 + $0x48] sm:$0xff]
        %v677 = vld [vmem:[%s666 + $0x50] sm:$0xff]
        %v678 = vld [vmem:[%s666 + $0x58] sm:$0xff]
        %v679 = vld [vmem:[%s666 + $0x60] sm:$0xff]
        %v680 = vld [vmem:[%s666 + $0x68] sm:$0xff]
        %v681 = vld [vmem:[%s666 + $0x70] sm:$0xff]
        %v682 = vld [vmem:[%s666 + $0x78] sm:$0xff]
        %v683 = vld [vmem:[%s666 + $0x80] sm:$0xff]
        %v684 = vld [vmem:[%s666 + $0x88] sm:$0xff]
        %v685 = vld [vmem:[%s666 + $0x90] sm:$0xff]
        %v686 = vld [vmem:[%s666 + $0x98] sm:$0xff]
        %v687 = vld [vmem:[%s666 + $0xa0] sm:$0xff]
        %v688 = vld [vmem:[%s666 + $0xa8] sm:$0xff]
        %v689 = vld [vmem:[%s666 + $0xb0] sm:$0xff]
        %v690 = vld [vmem:[%s666 + $0xb8] sm:$0xff]
        %v691 = vld [vmem:[%s666 + $0xc0] sm:$0xff]
        %v692 = vld [vmem:[%s666 + $0xc8] sm:$0xff]
        %v693 = vld [vmem:[%s666 + $0xd0] sm:$0xff]
        %v694 = vld [vmem:[%s666 + $0xd8] sm:$0xff]
        %v695 = vld [vmem:[%s666 + $0xe0] sm:$0xff]
        %v696 = vld [vmem:[%s666 + $0xe8] sm:$0xff]
        %v697 = vld [vmem:[%s666 + $0xf0] sm:$0x7]
        %v699 = vsel %vm407, %v697, 0
        %701 = vmatprep.subr.mxu0 0.0
        %702 = vmatpush1.msra.mxu0 %v667
        %703 = vmatprep.subr.mxu0 0.0
        %704 = vmatpush1.msra.mxu0 %v668
        %705 = vmatprep.subr.mxu0 0.0
        %706 = vmatpush1.msra.mxu0 %v669
        %707 = vmatprep.subr.mxu0 0.0
        %708 = vmatpush1.msra.mxu0 %v670
        %709 = vmatprep.subr.mxu0 0.0
        %710 = vmatpush1.msra.mxu0 %v671
        %711 = vmatprep.subr.mxu0 0.0
        %712 = vmatpush1.msra.mxu0 %v672
        %713 = vmatprep.subr.mxu0 0.0
        %714 = vmatpush1.msra.mxu0 %v673
        %715 = vmatprep.subr.mxu0 0.0
        %716 = vmatpush1.msra.mxu0 %v674
        %717 = vmatprep.subr.mxu0 0.0
        %718 = vmatpush1.msra.mxu0 %v675
        %719 = vmatprep.subr.mxu0 0.0
        %720 = vmatpush1.msra.mxu0 %v676
        %721 = vmatprep.subr.mxu0 0.0
        %722 = vmatpush1.msra.mxu0 %v677
        %723 = vmatprep.subr.mxu0 0.0
        %724 = vmatpush1.msra.mxu0 %v678
        %725 = vmatprep.subr.mxu0 0.0
        %726 = vmatpush1.msra.mxu0 %v679
        %727 = vmatprep.subr.mxu0 0.0
        %728 = vmatpush1.msra.mxu0 %v680
        %729 = vmatprep.subr.mxu0 0.0
        %730 = vmatpush1.msra.mxu0 %v681
        %731 = vmatprep.subr.mxu0 0.0
        %732 = vmatpush1.msra.mxu0 %v682
        %733 = vmatprep.subr.mxu0 0.0
        %734 = vmatpush1.msra.mxu0 %v683
        %735 = vmatprep.subr.mxu0 0.0
        %736 = vmatpush1.msra.mxu0 %v684
        %737 = vmatprep.subr.mxu0 0.0
        %738 = vmatpush1.msra.mxu0 %v685
        %739 = vmatprep.subr.mxu0 0.0
        %740 = vmatpush1.msra.mxu0 %v686
        %741 = vmatprep.subr.mxu0 0.0
        %742 = vmatpush1.msra.mxu0 %v687
        %743 = vmatprep.subr.mxu0 0.0
        %744 = vmatpush1.msra.mxu0 %v688
        %745 = vmatprep.subr.mxu0 0.0
        %746 = vmatpush1.msra.mxu0 %v689
        %747 = vmatprep.subr.mxu0 0.0
        %748 = vmatpush1.msra.mxu0 %v690
        %749 = vmatprep.subr.mxu0 0.0
        %750 = vmatpush1.msra.mxu0 %v691
        %751 = vmatprep.subr.mxu0 0.0
        %752 = vmatpush1.msra.mxu0 %v692
        %753 = vmatprep.subr.mxu0 0.0
        %754 = vmatpush1.msra.mxu0 %v693
        %755 = vmatprep.subr.mxu0 0.0
        %756 = vmatpush1.msra.mxu0 %v694
        %757 = vmatprep.subr.mxu0 0.0
        %758 = vmatpush1.msra.mxu0 %v695
        %759 = vmatprep.subr.mxu0 0.0
        %760 = vmatpush1.msra.mxu0 %v696
        %761 = vmatprep.subr.mxu0 0.0
        %762 = vmatpush1.msra.mxu0 %v699
        %763 = vmatprep.subr.mxu0 0.0
        %764 = vmatpush1.msra.mxu0 0.0
        %765 = vmatprep.mubr.f32.mxu0 %v381
        %766 = vmatmul.mubr.f32.gmra.mrb[0].mxu0 %v330
        %v767 = vpop.f32.mrb[0].mxu0
        %v768 = vadd.f32 0.0, %v767
        %v769 = vpop.f32.mrb[0].mxu0
        %770 = vmatprep.mubr.f32.mxu0 %v384
        %771 = vmatmul.mubr.f32.gmra.mrb[0].mxu0 %v332
        %v772 = vpop.f32.mrb[0].mxu0
        %v773 = vadd.f32 0.0, %v772
        %v774 = vpop.f32.mrb[0].mxu0
        %775 = vmatprep.mubr.f32.mxu0 %v387
        %776 = vmatmul.mubr.f32.gmra.mrb[0].mxu0 %v334
        %v777 = vpop.f32.mrb[0].mxu0
        %v778 = vadd.f32 0.0, %v777
        %v779 = vpop.f32.mrb[0].mxu0
        %780 = vmatprep.mubr.f32.mxu0 %v390
        %781 = vmatmul.mubr.f32.gmra.mrb[0].mxu0 %v336
        %v782 = vpop.f32.mrb[0].mxu0
        %v783 = vadd.f32 0.0, %v782
        %v784 = vpop.f32.mrb[0].mxu0
        %785 = vmatprep.mubr.f32.mxu0 %v393
        %786 = vmatmul.mubr.f32.gmra.mrb[0].mxu0 %v338
        %v787 = vpop.f32.mrb[0].mxu0
        %v788 = vadd.f32 0.0, %v787
        %v789 = vpop.f32.mrb[0].mxu0
        %790 = vmatprep.mubr.f32.mxu0 %v396
        %791 = vmatmul.mubr.f32.gmra.mrb[0].mxu0 %v340
        %v792 = vpop.f32.mrb[0].mxu0
        %v793 = vadd.f32 0.0, %v792
        %v794 = vpop.f32.mrb[0].mxu0
        %795 = vmatprep.mubr.f32.mxu0 %v399
        %796 = vmatmul.mubr.f32.gmra.mrb[0].mxu0 %v342
        %v797 = vpop.f32.mrb[0].mxu0
        %v798 = vadd.f32 0.0, %v797
        %v799 = vpop.f32.mrb[0].mxu0
        %800 = vmatprep.mubr.f32.mxu0 %v402
        %801 = vmatmul.mubr.f32.gmra.mrb[0].mxu0 %v344
        %v802 = vpop.f32.mrb[0].mxu0
        %v803 = vadd.f32 0.0, %v802
        %v804 = vpop.f32.mrb[0].mxu0
        %805 = vmatprep.mubr.f32.mxu0 %v405
        %806 = vmatmul.mubr.f32.gmra.mrb[0].mxu0 %v346
        %v807 = vpop.f32.mrb[0].mxu0
        %v808 = vadd.f32 0.0, %v807
        %v809 = vpop.f32.mrb[0].mxu0
        %810 = vdwg.mxu0
        %s811 = scalar_lea.vmem %s329, 744
        %v812 = vld [vmem:[%s811] sm:$0xff]
        %v813 = vld [vmem:[%s811 + $0x8] sm:$0xff]
        %v814 = vld [vmem:[%s811 + $0x10] sm:$0xff]
        %v815 = vld [vmem:[%s811 + $0x18] sm:$0xff]
        %v816 = vld [vmem:[%s811 + $0x20] sm:$0xff]
        %v817 = vld [vmem:[%s811 + $0x28] sm:$0xff]
        %v818 = vld [vmem:[%s811 + $0x30] sm:$0xff]
        %v819 = vld [vmem:[%s811 + $0x38] sm:$0xff]
        %v820 = vld [vmem:[%s811 + $0x40] sm:$0xff]
        %v821 = vld [vmem:[%s811 + $0x48] sm:$0xff]
        %v822 = vld [vmem:[%s811 + $0x50] sm:$0xff]
        %v823 = vld [vmem:[%s811 + $0x58] sm:$0xff]
        %v824 = vld [vmem:[%s811 + $0x60] sm:$0xff]
        %v825 = vld [vmem:[%s811 + $0x68] sm:$0xff]
        %v826 = vld [vmem:[%s811 + $0x70] sm:$0xff]
        %v827 = vld [vmem:[%s811 + $0x78] sm:$0xff]
        %v828 = vld [vmem:[%s811 + $0x80] sm:$0xff]
        %v829 = vld [vmem:[%s811 + $0x88] sm:$0xff]
        %v830 = vld [vmem:[%s811 + $0x90] sm:$0xff]
        %v831 = vld [vmem:[%s811 + $0x98] sm:$0xff]
        %v832 = vld [vmem:[%s811 + $0xa0] sm:$0xff]
        %v833 = vld [vmem:[%s811 + $0xa8] sm:$0xff]
        %v834 = vld [vmem:[%s811 + $0xb0] sm:$0xff]
        %v835 = vld [vmem:[%s811 + $0xb8] sm:$0xff]
        %v836 = vld [vmem:[%s811 + $0xc0] sm:$0xff]
        %v837 = vld [vmem:[%s811 + $0xc8] sm:$0xff]
        %v838 = vld [vmem:[%s811 + $0xd0] sm:$0xff]
        %v839 = vld [vmem:[%s811 + $0xd8] sm:$0xff]
        %v840 = vld [vmem:[%s811 + $0xe0] sm:$0xff]
        %v841 = vld [vmem:[%s811 + $0xe8] sm:$0xff]
        %v842 = vld [vmem:[%s811 + $0xf0] sm:$0x7]
        %v844 = vsel %vm407, %v842, 0
        %846 = vmatprep.subr.mxu0 0.0
        %847 = vmatpush1.msra.mxu0 %v812
        %848 = vmatprep.subr.mxu0 0.0
        %849 = vmatpush1.msra.mxu0 %v813
        %850 = vmatprep.subr.mxu0 0.0
        %851 = vmatpush1.msra.mxu0 %v814
        %852 = vmatprep.subr.mxu0 0.0
        %853 = vmatpush1.msra.mxu0 %v815
        %854 = vmatprep.subr.mxu0 0.0
        %855 = vmatpush1.msra.mxu0 %v816
        %856 = vmatprep.subr.mxu0 0.0
        %857 = vmatpush1.msra.mxu0 %v817
        %858 = vmatprep.subr.mxu0 0.0
        %859 = vmatpush1.msra.mxu0 %v818
        %860 = vmatprep.subr.mxu0 0.0
        %861 = vmatpush1.msra.mxu0 %v819
        %862 = vmatprep.subr.mxu0 0.0
        %863 = vmatpush1.msra.mxu0 %v820
        %864 = vmatprep.subr.mxu0 0.0
        %865 = vmatpush1.msra.mxu0 %v821
        %866 = vmatprep.subr.mxu0 0.0
        %867 = vmatpush1.msra.mxu0 %v822
        %868 = vmatprep.subr.mxu0 0.0
        %869 = vmatpush1.msra.mxu0 %v823
        %870 = vmatprep.subr.mxu0 0.0
        %871 = vmatpush1.msra.mxu0 %v824
        %872 = vmatprep.subr.mxu0 0.0
        %873 = vmatpush1.msra.mxu0 %v825
        %874 = vmatprep.subr.mxu0 0.0
        %875 = vmatpush1.msra.mxu0 %v826
        %876 = vmatprep.subr.mxu0 0.0
        %877 = vmatpush1.msra.mxu0 %v827
        %878 = vmatprep.subr.mxu0 0.0
        %879 = vmatpush1.msra.mxu0 %v828
        %880 = vmatprep.subr.mxu0 0.0
        %881 = vmatpush1.msra.mxu0 %v829
        %882 = vmatprep.subr.mxu0 0.0
        %883 = vmatpush1.msra.mxu0 %v830
        %884 = vmatprep.subr.mxu0 0.0
        %885 = vmatpush1.msra.mxu0 %v831
        %886 = vmatprep.subr.mxu0 0.0
        %887 = vmatpush1.msra.mxu0 %v832
        %888 = vmatprep.subr.mxu0 0.0
        %889 = vmatpush1.msra.mxu0 %v833
        %890 = vmatprep.subr.mxu0 0.0
        %891 = vmatpush1.msra.mxu0 %v834
        %892 = vmatprep.subr.mxu0 0.0
        %893 = vmatpush1.msra.mxu0 %v835
        %894 = vmatprep.subr.mxu0 0.0
        %895 = vmatpush1.msra.mxu0 %v836
        %896 = vmatprep.subr.mxu0 0.0
        %897 = vmatpush1.msra.mxu0 %v837
        %898 = vmatprep.subr.mxu0 0.0
        %899 = vmatpush1.msra.mxu0 %v838
        %900 = vmatprep.subr.mxu0 0.0
        %901 = vmatpush1.msra.mxu0 %v839
        %902 = vmatprep.subr.mxu0 0.0
        %903 = vmatpush1.msra.mxu0 %v840
        %904 = vmatprep.subr.mxu0 0.0
        %905 = vmatpush1.msra.mxu0 %v841
        %906 = vmatprep.subr.mxu0 0.0
        %907 = vmatpush1.msra.mxu0 %v844
        %908 = vmatprep.subr.mxu0 0.0
        %909 = vmatpush1.msra.mxu0 0.0
        %910 = vmatprep.mubr.f32.mxu0 %v381
        %911 = vmatmul.mubr.f32.gmra.mrb[0].mxu0 %v330
        %v912 = vpop.f32.mrb[0].mxu0
        %v913 = vadd.f32 0.0, %v912
        %v914 = vpop.f32.mrb[0].mxu0
        %915 = vmatprep.mubr.f32.mxu0 %v384
        %916 = vmatmul.mubr.f32.gmra.mrb[0].mxu0 %v332
        %v917 = vpop.f32.mrb[0].mxu0
        %v918 = vadd.f32 0.0, %v917
        %v919 = vpop.f32.mrb[0].mxu0
        %920 = vmatprep.mubr.f32.mxu0 %v387
        %921 = vmatmul.mubr.f32.gmra.mrb[0].mxu0 %v334
        %v922 = vpop.f32.mrb[0].mxu0
        %v923 = vadd.f32 0.0, %v922
        %v924 = vpop.f32.mrb[0].mxu0
        %925 = vmatprep.mubr.f32.mxu0 %v390
        %926 = vmatmul.mubr.f32.gmra.mrb[0].mxu0 %v336
        %v927 = vpop.f32.mrb[0].mxu0
        %v928 = vadd.f32 0.0, %v927
        %v929 = vpop.f32.mrb[0].mxu0
        %930 = vmatprep.mubr.f32.mxu0 %v393
        %931 = vmatmul.mubr.f32.gmra.mrb[0].mxu0 %v338
        %v932 = vpop.f32.mrb[0].mxu0
        %v933 = vadd.f32 0.0, %v932
        %v934 = vpop.f32.mrb[0].mxu0
        %935 = vmatprep.mubr.f32.mxu0 %v396
        %936 = vmatmul.mubr.f32.gmra.mrb[0].mxu0 %v340
        %v937 = vpop.f32.mrb[0].mxu0
        %v938 = vadd.f32 0.0, %v937
        %v939 = vpop.f32.mrb[0].mxu0
        %940 = vmatprep.mubr.f32.mxu0 %v399
        %941 = vmatmul.mubr.f32.gmra.mrb[0].mxu0 %v342
        %v942 = vpop.f32.mrb[0].mxu0
        %v943 = vadd.f32 0.0, %v942
        %v944 = vpop.f32.mrb[0].mxu0
        %945 = vmatprep.mubr.f32.mxu0 %v402
        %946 = vmatmul.mubr.f32.gmra.mrb[0].mxu0 %v344
        %v947 = vpop.f32.mrb[0].mxu0
        %v948 = vadd.f32 0.0, %v947
        %v949 = vpop.f32.mrb[0].mxu0
        %950 = vmatprep.mubr.f32.mxu0 %v405
        %951 = vmatmul.mubr.f32.gmra.mrb[0].mxu0 %v346
        %v952 = vpop.f32.mrb[0].mxu0
        %v953 = vadd.f32 0.0, %v952
        %v954 = vpop.f32.mrb[0].mxu0
        %955 = vdwg.mxu0
        %v956 = vmax.f32 %v478, %v623
        %v957 = vmax.f32 %v483, %v628
        %v958 = vmax.f32 %v488, %v633
        %v959 = vmax.f32 %v493, %v638
        %v960 = vmax.f32 %v498, %v643
        %v961 = vmax.f32 %v503, %v648
        %v962 = vmax.f32 %v508, %v653
        %v963 = vmax.f32 %v513, %v658
        %v964 = vmax.f32 %v518, %v663
        %v965 = vmax.f32 %v768, %v913
        %v966 = vmax.f32 %v773, %v918
        %v967 = vmax.f32 %v778, %v923
        %v968 = vmax.f32 %v783, %v928
        %v969 = vmax.f32 %v788, %v933
        %v970 = vmax.f32 %v793, %v938
        %v971 = vmax.f32 %v798, %v943
        %v972 = vmax.f32 %v803, %v948
        %v973 = vmax.f32 %v808, %v953
        %v974 = vmax.f32 %v956, %v965
        %v975 = vmax.f32 %v957, %v966
        %v976 = vmax.f32 %v958, %v967
        %v977 = vmax.f32 %v959, %v968
        %v978 = vmax.f32 %v960, %v969
        %v979 = vmax.f32 %v961, %v970
        %v980 = vmax.f32 %v962, %v971
        %v981 = vmax.f32 %v963, %v972
        %v982 = vmax.f32 %v964, %v973
        %v983 = vld [vmem:[%s2] sm:$0xff]
        %v984 = vld [vmem:[%s2 + $0x8] sm:$0xff]
        %vm985 = vcmask 588800
        %v987 = vsel %vm985, %v983, 0
        %v990 = vsel %vm985, %v984, 0
        %992 = vmatprep.subr.mxu0 0.0
        %993 = vmatpush1.msra.mxu0 %v974
        %994 = vmatprep.subr.mxu0 0.0
        %995 = vmatpush1.msra.mxu0 %v975
        %996 = vmatprep.subr.mxu0 0.0
        %997 = vmatpush1.msra.mxu0 %v976
        %998 = vmatprep.subr.mxu0 0.0
        %999 = vmatpush1.msra.mxu0 %v977
        %1000 = vmatprep.subr.mxu0 0.0
        %1001 = vmatpush1.msra.mxu0 %v978
        %1002 = vmatprep.subr.mxu0 0.0
        %1003 = vmatpush1.msra.mxu0 %v979
        %1004 = vmatprep.subr.mxu0 0.0
        %1005 = vmatpush1.msra.mxu0 %v980
        %1006 = vmatprep.subr.mxu0 0.0
        %1007 = vmatpush1.msra.mxu0 %v981
        %1008 = vmatprep.subr.mxu0 0.0
        %1009 = vmatpush1.msra.mxu0 %v982
        %1010 = vmatprep.subr.mxu0 0.0
        %1011 = vmatpush1.msra.mxu0 0.0
        %1012 = vmatprep.subr.mxu0 0.0
        %1013 = vmatpush1.msra.mxu0 0.0
        %1014 = vmatprep.subr.mxu0 0.0
        %1015 = vmatpush1.msra.mxu0 0.0
        %1016 = vmatprep.subr.mxu0 0.0
        %1017 = vmatpush1.msra.mxu0 0.0
        %1018 = vmatprep.subr.mxu0 0.0
        %1019 = vmatpush1.msra.mxu0 0.0
        %1020 = vmatprep.subr.mxu0 0.0
        %1021 = vmatpush1.msra.mxu0 0.0
        %1022 = vmatprep.subr.mxu0 0.0
        %1023 = vmatpush1.msra.mxu0 0.0
        %1024 = vmatprep.subr.mxu0 0.0
        %1025 = vmatpush1.msra.mxu0 0.0
        %1026 = vmatprep.subr.mxu0 0.0
        %1027 = vmatpush1.msra.mxu0 0.0
        %1028 = vmatprep.subr.mxu0 0.0
        %1029 = vmatpush1.msra.mxu0 0.0
        %1030 = vmatprep.subr.mxu0 0.0
        %1031 = vmatpush1.msra.mxu0 0.0
        %1032 = vmatprep.subr.mxu0 0.0
        %1033 = vmatpush1.msra.mxu0 0.0
        %1034 = vmatprep.subr.mxu0 0.0
        %1035 = vmatpush1.msra.mxu0 0.0
        %1036 = vmatprep.subr.mxu0 0.0
        %1037 = vmatpush1.msra.mxu0 0.0
        %1038 = vmatprep.subr.mxu0 0.0
        %1039 = vmatpush1.msra.mxu0 0.0
        %1040 = vmatprep.subr.mxu0 0.0
        %1041 = vmatpush1.msra.mxu0 0.0
        %1042 = vmatprep.subr.mxu0 0.0
        %1043 = vmatpush1.msra.mxu0 0.0
        %1044 = vmatprep.subr.mxu0 0.0
        %1045 = vmatpush1.msra.mxu0 0.0
        %1046 = vmatprep.subr.mxu0 0.0
        %1047 = vmatpush1.msra.mxu0 0.0
        %1048 = vmatprep.subr.mxu0 0.0
        %1049 = vmatpush1.msra.mxu0 0.0
        %1050 = vmatprep.subr.mxu0 0.0
        %1051 = vmatpush1.msra.mxu0 0.0
        %1052 = vmatprep.subr.mxu0 0.0
        %1053 = vmatpush1.msra.mxu0 0.0
        %1054 = vmatprep.subr.mxu0 0.0
        %1055 = vmatpush1.msra.mxu0 0.0
        %1056 = vmatprep.mubr.f32.mxu0 0.0
        %1057 = vmatmul.mubr.f32.gmra.mrb[0].mxu0 %v987
        %v1058 = vpop.f32.mrb[0].mxu0
        %v1059 = vadd.f32 0.0, %v1058
        %v1060 = vpop.f32.mrb[0].mxu0
        %1061 = vmatprep.mubr.f32.mxu0 0.0
        %1062 = vmatmul.mubr.f32.gmra.mrb[0].mxu0 %v990
        %v1063 = vpop.f32.mrb[0].mxu0
        %v1064 = vadd.f32 0.0, %v1063
        %v1065 = vpop.f32.mrb[0].mxu0
        %1066 = vdwg.mxu0
        %1069 = vrot.lane.b32.xlu0 %v1059, 127
        %v1070 = vpop.permute.xlu0 %1069
        %1071 = vrot.lane.b32.xlu0 %v1064, 127
        %v1072 = vpop.permute.xlu0 %1071
        %1075 = vrot.lane.b32.xlu0 %v1059, 126
        %v1076 = vpop.permute.xlu0 %1075
        %1077 = vrot.lane.b32.xlu0 %v1064, 126
        %v1078 = vpop.permute.xlu0 %1077
        %1081 = vrot.lane.b32.xlu0 %v1059, 118
        %v1082 = vpop.permute.xlu0 %1081
        %1083 = vrot.lane.b32.xlu0 %v1064, 118
        %v1084 = vpop.permute.xlu0 %1083
        %1087 = vrot.lane.b32.xlu0 %v1059, 117
        %v1088 = vpop.permute.xlu0 %1087
        %1089 = vrot.lane.b32.xlu0 %v1064, 117
        %v1090 = vpop.permute.xlu0 %1089
        %1093 = vrot.lane.b32.xlu0 %v1059, 116
        %v1094 = vpop.permute.xlu0 %1093
        %1095 = vrot.lane.b32.xlu0 %v1064, 116
        %v1096 = vpop.permute.xlu0 %1095
        %1099 = vrot.lane.b32.xlu0 %v1059, 108
        %v1100 = vpop.permute.xlu0 %1099
        %1101 = vrot.lane.b32.xlu0 %v1064, 108
        %v1102 = vpop.permute.xlu0 %1101
        %1105 = vrot.lane.b32.xlu0 %v1059, 107
        %v1106 = vpop.permute.xlu0 %1105
        %1107 = vrot.lane.b32.xlu0 %v1064, 107
        %v1108 = vpop.permute.xlu0 %1107
        %1111 = vrot.lane.b32.xlu0 %v1059, 106
        %v1112 = vpop.permute.xlu0 %1111
        %1113 = vrot.lane.b32.xlu0 %v1064, 106
        %v1114 = vpop.permute.xlu0 %1113
        %v1117 = vld [vmem:[%s3] sm:$0xff]
        %v1118 = vld [vmem:[%s3 + $0x8] sm:$0xff]
        %v1119 = vld [vmem:[%s3 + $0x10] sm:$0xff]
        %v1120 = vld [vmem:[%s3 + $0x18] sm:$0xff]
        %vm1121 = vcmask 130048
        %v1123 = vsel %vm1121, %v1118, 0
        %v1126 = vsel %vm1121, %v1120, 0
        %1128 = vmatprep.subr.mxu0 0.0
        %1129 = vmatpush1.msra.mxu0 %v1059
        %1130 = vmatprep.subr.mxu0 0.0
        %1131 = vmatpush1.msra.mxu0 %v1064
        %1132 = vmatprep.subr.mxu0 0.0
        %1133 = vmatpush1.msra.mxu0 %v1070
        %1134 = vmatprep.subr.mxu0 0.0
        %1135 = vmatpush1.msra.mxu0 %v1072
        %1136 = vmatprep.subr.mxu0 0.0
        %1137 = vmatpush1.msra.mxu0 %v1076
        %1138 = vmatprep.subr.mxu0 0.0
        %1139 = vmatpush1.msra.mxu0 %v1078
        %1140 = vmatprep.subr.mxu0 0.0
        %1141 = vmatpush1.msra.mxu0 %v1082
        %1142 = vmatprep.subr.mxu0 0.0
        %1143 = vmatpush1.msra.mxu0 %v1084
        %1144 = vmatprep.subr.mxu0 0.0
        %1145 = vmatpush1.msra.mxu0 %v1088
        %1146 = vmatprep.subr.mxu0 0.0
        %1147 = vmatpush1.msra.mxu0 %v1090
        %1148 = vmatprep.subr.mxu0 0.0
        %1149 = vmatpush1.msra.mxu0 %v1094
        %1150 = vmatprep.subr.mxu0 0.0
        %1151 = vmatpush1.msra.mxu0 %v1096
        %1152 = vmatprep.subr.mxu0 0.0
        %1153 = vmatpush1.msra.mxu0 %v1100
        %1154 = vmatprep.subr.mxu0 0.0
        %1155 = vmatpush1.msra.mxu0 %v1102
        %1156 = vmatprep.subr.mxu0 0.0
        %1157 = vmatpush1.msra.mxu0 %v1106
        %1158 = vmatprep.subr.mxu0 0.0
        %1159 = vmatpush1.msra.mxu0 %v1108
        %1160 = vmatprep.subr.mxu0 0.0
        %1161 = vmatpush1.msra.mxu0 %v1112
        %1162 = vmatprep.subr.mxu0 0.0
        %1163 = vmatpush1.msra.mxu0 %v1114
        %1164 = vmatprep.subr.mxu0 0.0
        %1165 = vmatpush1.msra.mxu0 0.0
        %1166 = vmatprep.subr.mxu0 0.0
        %1167 = vmatpush1.msra.mxu0 0.0
        %1168 = vmatprep.subr.mxu0 0.0
        %1169 = vmatpush1.msra.mxu0 0.0
        %1170 = vmatprep.subr.mxu0 0.0
        %1171 = vmatpush1.msra.mxu0 0.0
        %1172 = vmatprep.subr.mxu0 0.0
        %1173 = vmatpush1.msra.mxu0 0.0
        %1174 = vmatprep.subr.mxu0 0.0
        %1175 = vmatpush1.msra.mxu0 0.0
        %1176 = vmatprep.subr.mxu0 0.0
        %1177 = vmatpush1.msra.mxu0 0.0
        %1178 = vmatprep.subr.mxu0 0.0
        %1179 = vmatpush1.msra.mxu0 0.0
        %1180 = vmatprep.subr.mxu0 0.0
        %1181 = vmatpush1.msra.mxu0 0.0
        %1182 = vmatprep.subr.mxu0 0.0
        %1183 = vmatpush1.msra.mxu0 0.0
        %1184 = vmatprep.subr.mxu0 0.0
        %1185 = vmatpush1.msra.mxu0 0.0
        %1186 = vmatprep.subr.mxu0 0.0
        %1187 = vmatpush1.msra.mxu0 0.0
        %1188 = vmatprep.subr.mxu0 0.0
        %1189 = vmatpush1.msra.mxu0 0.0
        %1190 = vmatprep.subr.mxu0 0.0
        %1191 = vmatpush1.msra.mxu0 0.0
        %1192 = vmatprep.mubr.f32.mxu0 %v1123
        %1193 = vmatmul.mubr.f32.gmra.mrb[0].mxu0 %v1117
        %v1194 = vpop.f32.mrb[0].mxu0
        %v1195 = vadd.f32 0.0, %v1194
        %v1196 = vpop.f32.mrb[0].mxu0
        %1197 = vmatprep.mubr.f32.mxu0 %v1126
        %1198 = vmatmul.mubr.f32.gmra.mrb[0].mxu0 %v1119
        %v1199 = vpop.f32.mrb[0].mxu0
        %v1200 = vadd.f32 0.0, %v1199
        %v1201 = vpop.f32.mrb[0].mxu0
        %1202 = vdwg.mxu0
        %v1203 = vld [vmem:[%s4] sm:$0xff]
        %v1204 = vld [vmem:[%s4 + $0x8] sm:$0xff]
        %1206 = vset.pattern.permute.xlu0 0
        %1207 = vperm.xlu0 %1206, %v1203
        %v1208 = vpop.permute.xlu0 %1207
        %1211 = vset.pattern.permute.xlu0 0
        %1212 = vperm.xlu0 %1211, %v1204
        %v1213 = vpop.permute.xlu0 %1212
        %v1215 = vmul.f32 %v1195, %v1208
        %v1216 = vmul.f32 %v1200, %v1213
        %v1217 = vld [vmem:[%s5] sm:$0xff]
        %v1218 = vld [vmem:[%s5 + $0x8] sm:$0xff]
        %1220 = vset.pattern.permute.xlu0 0
        %1221 = vperm.xlu0 %1220, %v1217
        %v1222 = vpop.permute.xlu0 %1221
        %1225 = vset.pattern.permute.xlu0 0
        %1226 = vperm.xlu0 %1225, %v1218
        %v1227 = vpop.permute.xlu0 %1226
        %v1229 = vadd.f32 %v1215, %v1222
        %v1230 = vadd.f32 %v1216, %v1227
        %1233 = vrot.lane.b32.xlu0 %v1229, 127
        %v1234 = vpop.permute.xlu0 %1233
        %1235 = vrot.lane.b32.xlu0 %v1230, 127
        %v1236 = vpop.permute.xlu0 %1235
        %1239 = vrot.lane.b32.xlu0 %v1229, 126
        %v1240 = vpop.permute.xlu0 %1239
        %1241 = vrot.lane.b32.xlu0 %v1230, 126
        %v1242 = vpop.permute.xlu0 %1241
        %1245 = vrot.lane.b32.xlu0 %v1229, 118
        %v1246 = vpop.permute.xlu0 %1245
        %1247 = vrot.lane.b32.xlu0 %v1230, 118
        %v1248 = vpop.permute.xlu0 %1247
        %1251 = vrot.lane.b32.xlu0 %v1229, 117
        %v1252 = vpop.permute.xlu0 %1251
        %1253 = vrot.lane.b32.xlu0 %v1230, 117
        %v1254 = vpop.permute.xlu0 %1253
        %1257 = vrot.lane.b32.xlu0 %v1229, 116
        %v1258 = vpop.permute.xlu0 %1257
        %1259 = vrot.lane.b32.xlu0 %v1230, 116
        %v1260 = vpop.permute.xlu0 %1259
        %1263 = vrot.lane.b32.xlu0 %v1229, 108
        %v1264 = vpop.permute.xlu0 %1263
        %1265 = vrot.lane.b32.xlu0 %v1230, 108
        %v1266 = vpop.permute.xlu0 %1265
        %1269 = vrot.lane.b32.xlu0 %v1229, 107
        %v1270 = vpop.permute.xlu0 %1269
        %1271 = vrot.lane.b32.xlu0 %v1230, 107
        %v1272 = vpop.permute.xlu0 %1271
        %1275 = vrot.lane.b32.xlu0 %v1229, 106
        %v1276 = vpop.permute.xlu0 %1275
        %1277 = vrot.lane.b32.xlu0 %v1230, 106
        %v1278 = vpop.permute.xlu0 %1277
        %v1281 = vld [vmem:[%s6] sm:$0xff]
        %v1283 = vcombine.high %v1281, %v1281
        %v1284 = vsel %vm1121, %v1283, 0
        %1286 = vmatprep.subr.mxu0 0.0
        %1287 = vmatpush1.msra.mxu0 %v1229
        %1288 = vmatprep.subr.mxu0 0.0
        %1289 = vmatpush1.msra.mxu0 %v1230
        %1290 = vmatprep.subr.mxu0 0.0
        %1291 = vmatpush1.msra.mxu0 %v1234
        %1292 = vmatprep.subr.mxu0 0.0
        %1293 = vmatpush1.msra.mxu0 %v1236
        %1294 = vmatprep.subr.mxu0 0.0
        %1295 = vmatpush1.msra.mxu0 %v1240
        %1296 = vmatprep.subr.mxu0 0.0
        %1297 = vmatpush1.msra.mxu0 %v1242
        %1298 = vmatprep.subr.mxu0 0.0
        %1299 = vmatpush1.msra.mxu0 %v1246
        %1300 = vmatprep.subr.mxu0 0.0
        %1301 = vmatpush1.msra.mxu0 %v1248
        %1302 = vmatprep.subr.mxu0 0.0
        %1303 = vmatpush1.msra.mxu0 %v1252
        %1304 = vmatprep.subr.mxu0 0.0
        %1305 = vmatpush1.msra.mxu0 %v1254
        %1306 = vmatprep.subr.mxu0 0.0
        %1307 = vmatpush1.msra.mxu0 %v1258
        %1308 = vmatprep.subr.mxu0 0.0
        %1309 = vmatpush1.msra.mxu0 %v1260
        %1310 = vmatprep.subr.mxu0 0.0
        %1311 = vmatpush1.msra.mxu0 %v1264
        %1312 = vmatprep.subr.mxu0 0.0
        %1313 = vmatpush1.msra.mxu0 %v1266
        %1314 = vmatprep.subr.mxu0 0.0
        %1315 = vmatpush1.msra.mxu0 %v1270
        %1316 = vmatprep.subr.mxu0 0.0
        %1317 = vmatpush1.msra.mxu0 %v1272
        %1318 = vmatprep.subr.mxu0 0.0
        %1319 = vmatpush1.msra.mxu0 %v1276
        %1320 = vmatprep.subr.mxu0 0.0
        %1321 = vmatpush1.msra.mxu0 %v1278
        %1322 = vmatprep.subr.mxu0 0.0
        %1323 = vmatpush1.msra.mxu0 0.0
        %1324 = vmatprep.subr.mxu0 0.0
        %1325 = vmatpush1.msra.mxu0 0.0
        %1326 = vmatprep.subr.mxu0 0.0
        %1327 = vmatpush1.msra.mxu0 0.0
        %1328 = vmatprep.subr.mxu0 0.0
        %1329 = vmatpush1.msra.mxu0 0.0
        %1330 = vmatprep.subr.mxu0 0.0
        %1331 = vmatpush1.msra.mxu0 0.0
        %1332 = vmatprep.subr.mxu0 0.0
        %1333 = vmatpush1.msra.mxu0 0.0
        %1334 = vmatprep.subr.mxu0 0.0
        %1335 = vmatpush1.msra.mxu0 0.0
        %1336 = vmatprep.subr.mxu0 0.0
        %1337 = vmatpush1.msra.mxu0 0.0
        %1338 = vmatprep.subr.mxu0 0.0
        %1339 = vmatpush1.msra.mxu0 0.0
        %1340 = vmatprep.subr.mxu0 0.0
        %1341 = vmatpush1.msra.mxu0 0.0
        %1342 = vmatprep.subr.mxu0 0.0
        %1343 = vmatpush1.msra.mxu0 0.0
        %1344 = vmatprep.subr.mxu0 0.0
        %1345 = vmatpush1.msra.mxu0 0.0
        %1346 = vmatprep.subr.mxu0 0.0
        %1347 = vmatpush1.msra.mxu0 0.0
        %1348 = vmatprep.subr.mxu0 0.0
        %1349 = vmatpush1.msra.mxu0 0.0
        %1350 = vmatprep.mubr.f32.mxu0 %v1284
        %1351 = vmatmul.mubr.f32.gmra.mrb[0].mxu0 %v1281
        %v1352 = vpop.f32.mrb[0].mxu0
        %v1353 = vadd.f32 0.0, %v1352
        %v1354 = vpop.f32.mrb[0].mxu0
        %1355 = vdwg.mxu0
        %v1356 = vld [vmem:[%s7] sm:$0xff]
        %v1357 = vld [vmem:[%s7 + $0x8] sm:$0xff]
        %v1358 = vld [vmem:[%s7 + $0x10] sm:$0xff]
        %v1359 = vld [vmem:[%s7 + $0x18] sm:$0xff]
        %v1360 = vld [vmem:[%s7 + $0x20] sm:$0xff]
        %v1361 = vld [vmem:[%s7 + $0x28] sm:$0xff]
        %v1362 = vld [vmem:[%s7 + $0x30] sm:$0xff]
        %vm1363 = vcmask 457728
        %v1365 = vsel %vm1363, %v1353, 0
        %1367 = vmatprep.subr.mxu0 0.0
        %1368 = vmatpush1.msra.mxu0 %v1356
        %1369 = vmatprep.subr.mxu0 0.0
        %1370 = vmatpush1.msra.mxu0 %v1357
        %1371 = vmatprep.subr.mxu0 0.0
        %1372 = vmatpush1.msra.mxu0 %v1358
        %1373 = vmatprep.subr.mxu0 0.0
        %1374 = vmatpush1.msra.mxu0 %v1359
        %1375 = vmatprep.subr.mxu0 0.0
        %1376 = vmatpush1.msra.mxu0 %v1360
        %1377 = vmatprep.subr.mxu0 0.0
        %1378 = vmatpush1.msra.mxu0 %v1361
        %1379 = vmatprep.subr.mxu0 0.0
        %1380 = vmatpush1.msra.mxu0 %v1362
        %1381 = vmatprep.subr.mxu0 0.0
        %1382 = vmatpush1.msra.mxu0 0.0
        %1383 = vmatprep.subr.mxu0 0.0
        %1384 = vmatpush1.msra.mxu0 0.0
        %1385 = vmatprep.subr.mxu0 0.0
        %1386 = vmatpush1.msra.mxu0 0.0
        %1387 = vmatprep.subr.mxu0 0.0
        %1388 = vmatpush1.msra.mxu0 0.0
        %1389 = vmatprep.subr.mxu0 0.0
        %1390 = vmatpush1.msra.mxu0 0.0
        %1391 = vmatprep.subr.mxu0 0.0
        %1392 = vmatpush1.msra.mxu0 0.0
        %1393 = vmatprep.subr.mxu0 0.0
        %1394 = vmatpush1.msra.mxu0 0.0
        %1395 = vmatprep.subr.mxu0 0.0
        %1396 = vmatpush1.msra.mxu0 0.0
        %1397 = vmatprep.subr.mxu0 0.0
        %1398 = vmatpush1.msra.mxu0 0.0
        %1399 = vmatprep.subr.mxu0 0.0
        %1400 = vmatpush1.msra.mxu0 0.0
        %1401 = vmatprep.subr.mxu0 0.0
        %1402 = vmatpush1.msra.mxu0 0.0
        %1403 = vmatprep.subr.mxu0 0.0
        %1404 = vmatpush1.msra.mxu0 0.0
        %1405 = vmatprep.subr.mxu0 0.0
        %1406 = vmatpush1.msra.mxu0 0.0
        %1407 = vmatprep.subr.mxu0 0.0
        %1408 = vmatpush1.msra.mxu0 0.0
        %1409 = vmatprep.subr.mxu0 0.0
        %1410 = vmatpush1.msra.mxu0 0.0
        %1411 = vmatprep.subr.mxu0 0.0
        %1412 = vmatpush1.msra.mxu0 0.0
        %1413 = vmatprep.subr.mxu0 0.0
        %1414 = vmatpush1.msra.mxu0 0.0
        %1415 = vmatprep.subr.mxu0 0.0
        %1416 = vmatpush1.msra.mxu0 0.0
        %1417 = vmatprep.subr.mxu0 0.0
        %1418 = vmatpush1.msra.mxu0 0.0
        %1419 = vmatprep.subr.mxu0 0.0
        %1420 = vmatpush1.msra.mxu0 0.0
        %1421 = vmatprep.subr.mxu0 0.0
        %1422 = vmatpush1.msra.mxu0 0.0
        %1423 = vmatprep.subr.mxu0 0.0
        %1424 = vmatpush1.msra.mxu0 0.0
        %1425 = vmatprep.subr.mxu0 0.0
        %1426 = vmatpush1.msra.mxu0 0.0
        %1427 = vmatprep.subr.mxu0 0.0
        %1428 = vmatpush1.msra.mxu0 0.0
        %1429 = vmatprep.subr.mxu0 0.0
        %1430 = vmatpush1.msra.mxu0 0.0
        %1431 = vmatprep.mubr.f32.mxu0 0.0
        %1432 = vmatmul.mubr.f32.gmra.mrb[0].mxu0 %v1365
        %v1433 = vpop.f32.mrb[0].mxu0
        %v1434 = vadd.f32 0.0, %v1433
        %v1435 = vpop.f32.mrb[0].mxu0
        %1436 = vdwg.mxu0
        %v1437 = vld [vmem:[%s8] sm:$0x1]
        %v1439 = vrot.slane %v1434, 1
        %1440 = vrot.lane.b32.xlu0 %v1439, 118
        %v1441 = vpop.permute.xlu0 %1440
        %v1443 = vadd.f32 %v1434, %v1441
        %v1445 = vrot.slane %v1443, 2
        %1446 = vrot.lane.b32.xlu0 %v1445, 108
        %v1447 = vpop.permute.xlu0 %1446
        %v1449 = vadd.f32 %v1443, %v1447
        %v1450 = vadd.f32 %v1437, %v1449
        %vm1451 = vcmask 73728
        %v1452 = vsel %vm1451, %v1450, -inf
        %1453 = vmax.xlane.f32.xlu0 %v1452
        %v1454 = vpop.xlane.xlu0 %1453
        %v1455 = vsub.f32 %v1450, %v1454
        %v1456 = vmul.f32 %v1455, 1.442695
        %v1457 = vpow.pop %v1456
        %v1458 = vsel %vm1451, %v1457, 0.0
        %1459 = vadd.xlane.f32.xlu0 %v1458
        %v1460 = vpop.xlane.xlu0 %1459
        %v1461 = vrcp.pop %v1460
        %v1462 = vmul.f32 %v1457, %v1461
        %1463 = vst.msk [vmem:[%s324] sm:$0x1] %vm1451, %v1462
        %s1464 = sand.u32 %s225, 1
        %s1465 = scalar_lea.sflag [#allocation3], %s1464
        %s1466 = sand.u32 %s225, 1
        %s1467 = scalar_lea.vmem [#allocation2], %s1466
        // Predicated region
        $region57: #{testmodel_forward.1} parent=55 // pred_check
          %p1468 = pneg %p235
        $region58: #{testmodel_forward.1} parent=55 // pred_check_branch
          %1470 = sbr.rel (%p1468) target = $region60
        $region59: #{testmodel_forward.1} parent=55 // pred_region
          %s1472 = ssub.s32 16, 16
          %1473 = vsyncadd %s1465, %s1472
          %s1474 = smul.addr %s23, 16
          %s1475 = scalar_lea.hbm %s9, %s1474
          %s1477 = sshll.u32 %s1467, 4
          %s1478 = int_to_ptr.vmem [resolvable:$true] %s1477
          %1480 = dma.vmem_to_hbm [thread:$0]  %s1478, 16, %s1475, %s1465
        $region60: #{testmodel_forward.1} parent=55 // pred_fallthru
          _
      $region56: #{testmodel_forward.1} parent=5 // pred_fallthru
        _
      %p1481 = scmp.le.s32.totalorder 2, %s18
      // Predicated region
      $region61: #{testmodel_forward.1} parent=5 // pred_check
        %p1482 = pneg %p1481
      $region62: #{testmodel_forward.1} parent=5 // pred_check_branch
        %1484 = sbr.rel (%p1482) target = $region64
      $region63: #{testmodel_forward.1} parent=5 // pred_region
        %s1485 = ssub.s32 %s18, 2
        // Predicated region
        $region65: #{testmodel_forward.1} parent=63 // pred_check
          %p1486 = pneg %p241
        $region66: #{testmodel_forward.1} parent=63 // pred_check_branch
          %1488 = sbr.rel (%p1486) target = $region68
        $region67: #{testmodel_forward.1} parent=63 // pred_region
          %s1489 = sand.u32 %s226, 1
          %s1490 = scalar_lea.sflag [#allocation3], %s1489
          %s1491 = sand.u32 %s226, 1
          %s1492 = scalar_lea.vmem [#allocation2], %s1491
          %1493 = dma.done %s1490, 16
        $region68: #{testmodel_forward.1} parent=63 // pred_fallthru
          _
      $region64: #{testmodel_forward.1} parent=5 // pred_fallthru
        _
    $region6: #{testmodel_forward.1} parent=1 // loop_footer
      %s22 = sadd.s32 1, %s18
    $region7: #{testmodel_forward.1} parent=1 // loop_footer_branch
      %17 = sbr.rel target = $region3
    $region8: #{testmodel_forward.1} parent=1 // loop_exit
      _
    %1494 = vsyncpa [#allocation3], 1
    %s1495 = scalar_lea.sflag [#allocation3], 1
    %1496 = vsyncpa %s1495, 1

</llo_original>
